<compile_context>
chip_gen: v7x
topology: tpu7x:2x2x1
jax: 0.10.0
libtpu: 0.0.40
codegen_flags: <defaults>
</compile_context>

<pallas_src>
import functools

import jax
import jax.numpy as jnp
from jax.experimental import pallas as pl
from jax.experimental.pallas import tpu as pltpu


def _round_up(x, m):
    return (x + m - 1) // m * m


# ----------------------------------------------------------------------------
# Kernel: one grid step processes one (batch tile, time chunk). h / acc are
# carried in VMEM scratch across time chunks.
# ----------------------------------------------------------------------------
def gru_classifier_kernel(gi_ref, w_hh_ref, b_hh_ref, w_fc_ref, b_fc_ref,
                          out_ref, h_ref, acc_ref, *, t_total):
    """
    gi_ref:   (Tc, Bt, 3H)  precomputed x_t @ W_ih + b_ih (bf16), time-major
    w_hh_ref: (H, 3H)       recurrent weights, stored (in_dim, out_dim), f32
    b_hh_ref: (1, 3H)
    w_fc_ref: (H, Cp)       final projection, class dim zero-padded to lanes
    b_fc_ref: (1, Cp)
    out_ref:  (Bt, Cp)
    h_ref:    (Bt, H)  f32 scratch, hidden state carried across time chunks
    acc_ref:  (Bt, H)  f32 scratch, running sum of hidden states
    """
    Tc, Bt, _ = gi_ref.shape
    H = w_hh_ref.shape[0]
    t_chunk = pl.program_id(1)

    @pl.when(t_chunk == 0)
    def _init():
        h_ref[...] = jnp.zeros_like(h_ref)
        acc_ref[...] = jnp.zeros_like(acc_ref)

    # Hoisted loop invariants (JAX does not CSE broadcast_in_dim).
    w_hh = w_hh_ref[...]                                     # (H, 3H)
    b_hh = jnp.broadcast_to(b_hh_ref[...], (Bt, 3 * H))      # (Bt, 3H)
    t0 = t_chunk * Tc

    def step(i, carry):
        h, acc = carry
        gi = gi_ref[i].astype(jnp.float32)                   # (Bt, 3H)
        gh = jnp.dot(h, w_hh, preferred_element_type=jnp.float32) + b_hh
        # PyTorch gate order along the 3H axis: [r | z | n].
        # r and z share one fused sigmoid over the first 2H lanes.
        rz = jax.nn.sigmoid(gi[:, :2 * H] + gh[:, :2 * H])
        r = rz[:, :H]
        z = rz[:, H:]
        n = jnp.tanh(gi[:, 2 * H:] + r * gh[:, 2 * H:])
        h_new = (1.0 - z) * n + z * h
        # Mask out steps past the true sequence length (time-dim padding).
        valid = (t0 + i) < t_total
        h_next = jnp.where(valid, h_new, h)
        acc_next = jnp.where(valid, acc + h_new, acc)
        return h_next, acc_next

    h, acc = jax.lax.fori_loop(0, Tc, step, (h_ref[...], acc_ref[...]),
                               unroll=min(4, Tc))
    h_ref[...] = h
    acc_ref[...] = acc

    @pl.when(t_chunk == pl.num_programs(1) - 1)
    def _finalize():
        mean_h = acc_ref[...] * (1.0 / jnp.float32(t_total))   # (Bt, H)
        out_ref[...] = (jnp.dot(mean_h, w_fc_ref[...],
                                preferred_element_type=jnp.float32)
                        + b_fc_ref[...]).astype(out_ref.dtype)


def gru_classifier_forward(tokens, embed, w_ih, w_hh, b_ih, b_hh, w_fc, b_fc,
                           *, tc=None):
    """tokens: (B, T) int32. Weight matrices stored (in_dim, out_dim).
    Returns logits (B, C) float32."""
    B, T = tokens.shape
    H = w_hh.shape[0]
    C = w_fc.shape[1]

    # Batch tile: at least 16 rows (bf16 sublane packing, better MXU fill);
    # grow toward the MXU height when the real batch allows.
    if B <= 16:
        Bt = 16
    else:
        Bt = min(_round_up(B, 16), 128)
    Bp = _round_up(B, Bt)
    Cp = max(128, _round_up(C, 128))     # lane-dense output store

    # Fused embedding + input projection table, stored bf16:
    # gi[b, t] = embed[token] @ W_ih + b_ih.
    fused_tbl = (embed.astype(jnp.float32) @ w_ih + b_ih).astype(jnp.bfloat16)

    # Pad the tiny int32 token array (not the big activation) and gather
    # time-major directly: (T, Bp, 3H) with no extra transpose/pad round-trip.
    tokens_p = tokens if Bp == B else jnp.pad(tokens, ((0, Bp - B), (0, 0)))
    gi = jnp.take(fused_tbl, tokens_p.T, axis=0)             # (T, Bp, 3H) bf16

    # Time-chunk size: ~6 MiB per gi buffer (~12 MiB double-buffered) keeps
    # the working set well inside v7x's 64 MiB physical VMEM; v5e/v6e have
    # even more headroom. Padded time steps are masked inside the kernel.
    if tc is None:
        tc = max(1, min(T, (6 * 2**20) // (Bt * 3 * H * 2)))
    tc = min(tc, T)
    Tp = _round_up(T, tc)
    if Tp != T:
        gi = jnp.pad(gi, ((0, Tp - T), (0, 0), (0, 0)))

    w_hh_f = w_hh.astype(jnp.float32)
    b_hh2 = b_hh.reshape(1, 3 * H).astype(jnp.float32)
    w_fc_p = jnp.pad(w_fc.astype(jnp.float32), ((0, 0), (0, Cp - C)))
    b_fc_p = jnp.pad(b_fc.astype(jnp.float32), ((0, Cp - C),)).reshape(1, Cp)

    num_b = Bp // Bt
    num_t = Tp // tc

    grid_spec = pltpu.PrefetchScalarGridSpec(
        num_scalar_prefetch=0,
        grid=(num_b, num_t),
        in_specs=[
            pl.BlockSpec((tc, Bt, 3 * H), lambda b, t: (t, b, 0)),
            pl.BlockSpec((H, 3 * H), lambda b, t: (0, 0)),
            pl.BlockSpec((1, 3 * H), lambda b, t: (0, 0)),
            pl.BlockSpec((H, Cp), lambda b, t: (0, 0)),
            pl.BlockSpec((1, Cp), lambda b, t: (0, 0)),
        ],
        out_specs=pl.BlockSpec((Bt, Cp), lambda b, t: (b, 0)),
        scratch_shapes=[
            pltpu.VMEM((Bt, H), jnp.float32),   # h
            pltpu.VMEM((Bt, H), jnp.float32),   # acc (sum of hidden states)
        ],
    )

    # Explicit VMEM budget computed from actual buffer sizes (with headroom),
    # capped below v7x's 64 MiB physical VMEM.
    gi_bytes = tc * Bt * 3 * H * 2
    w_bytes = (w_hh_f.size + b_hh2.size + w_fc_p.size + b_fc_p.size) * 4
    scratch_bytes = 2 * Bt * H * 4
    out_bytes = Bt * Cp * 4
    needed = 2 * gi_bytes + 2 * w_bytes + scratch_bytes + 2 * out_bytes
    vmem_limit = int(min(64 * 2**20, max(32 * 2**20, needed + 4 * 2**20)))

    out = pl.pallas_call(
        functools.partial(gru_classifier_kernel, t_total=T),
        out_shape=jax.ShapeDtypeStruct((Bp, Cp), jnp.float32),
        grid_spec=grid_spec,
        compiler_params=pltpu.CompilerParams(
            dimension_semantics=("parallel", "arbitrary"),
            vmem_limit_bytes=vmem_limit),
    )(gi, w_hh_f, b_hh2, w_fc_p, b_fc_p)

    return out[:B, :C]


# ----------------------------------------------------------------------------
# Pure-JAX reference (mirrors torch.nn.GRU semantics) for a sanity check.
# ----------------------------------------------------------------------------
def reference_forward(tokens, embed, w_ih, w_hh, b_ih, b_hh, w_fc, b_fc):
    H = w_hh.shape[0]
    x_emb = jnp.take(embed, tokens, axis=0)                  # (B, T, E)
    B, T, _ = x_emb.shape

    def step(h, x_t):
        gi = x_t @ w_ih + b_ih
        gh = h @ w_hh + b_hh
        r = jax.nn.sigmoid(gi[:, :H] + gh[:, :H])
        z = jax.nn.sigmoid(gi[:, H:2 * H] + gh[:, H:2 * H])
        n = jnp.tanh(gi[:, 2 * H:] + r * gh[:, 2 * H:])
        h_new = (1.0 - z) * n + z * h
        return h_new, h_new

    h0 = jnp.zeros((B, H), jnp.float32)
    _, hs = jax.lax.scan(step, h0, jnp.transpose(x_emb, (1, 0, 2)))
    mean_h = hs.mean(axis=0)
    return mean_h @ w_fc + b_fc


if __name__ == "__main__":
    VOCAB, CLASS_NUM, EMBED_DIM, HIDDEN = 50, 2, 128, 128
    B, T = 2, 8

    key = jax.random.PRNGKey(0)
    keys = jax.random.split(key, 8)
    scale = 1.0 / jnp.sqrt(jnp.float32(HIDDEN))

    # PyTorch-equivalent parameters; weight matrices pre-transposed to (in, out).
    embed = jax.random.normal(keys[0], (VOCAB, EMBED_DIM), jnp.float32)
    w_ih = jax.random.uniform(keys[1], (EMBED_DIM, 3 * HIDDEN), jnp.float32,
                              -scale, scale)
    w_hh = jax.random.uniform(keys[2], (HIDDEN, 3 * HIDDEN), jnp.float32,
                              -scale, scale)
    b_ih = jax.random.uniform(keys[3], (3 * HIDDEN,), jnp.float32, -scale, scale)
    b_hh = jax.random.uniform(keys[4], (3 * HIDDEN,), jnp.float32, -scale, scale)
    w_fc = jax.random.uniform(keys[5], (HIDDEN, CLASS_NUM), jnp.float32,
                              -scale, scale)
    b_fc = jax.random.uniform(keys[6], (CLASS_NUM,), jnp.float32, -scale, scale)

    tokens = jax.random.randint(keys[7], (B, T), 0, VOCAB, dtype=jnp.int32)

    # tc=4 with T=8 exercises the multi-chunk pipeline (init / carry / finalize).
    logits = gru_classifier_forward(tokens, embed, w_ih, w_hh, b_ih, b_hh,
                                    w_fc, b_fc, tc=4)
    logits = jax.block_until_ready(logits)

    ref = reference_forward(tokens, embed, w_ih, w_hh, b_ih, b_hh, w_fc, b_fc)
    assert logits.shape == (B, CLASS_NUM)
    # gi is stored in bf16 (input-projection quantization), so compare with a
    # bf16-appropriate tolerance; gate math / accumulation are f32.
    assert jnp.allclose(logits, ref, atol=2e-2, rtol=2e-2), (logits, ref)

    print("KERNEL_OK")
</pallas_src>

<mosaic_0001>
module attributes {stable_mosaic.version = 11 : i64} {
  func.func @gru_classifier_kernel(%arg0: i32, %arg1: i32, %arg2: memref<4x16x384xbf16, #tpu.memory_space<vmem>>, %arg3: memref<128x384xf32, #tpu.memory_space<vmem>>, %arg4: memref<1x384xf32, #tpu.memory_space<vmem>>, %arg5: memref<128x128xf32, #tpu.memory_space<vmem>>, %arg6: memref<1x128xf32, #tpu.memory_space<vmem>>, %arg7: memref<16x128xf32, #tpu.memory_space<vmem>>, %arg8: memref<16x128xf32, #tpu.memory_space<vmem>>, %arg9: memref<16x128xf32, #tpu.memory_space<vmem>>) attributes {dimension_semantics = [#tpu.dimension_semantics<parallel>, #tpu.dimension_semantics<arbitrary>], iteration_bounds = array<i64: 1, 2>, scalar_prefetch = 0 : i64, scratch_operands = 2 : i64, tpu.core_type = #tpu.core_type<tc>, window_params = [{transform_indices = @transform_0, window_bounds = array<i64: 4, 16, 384>}, {pipeline_mode = #tpu.pipeline_mode<synchronous>, transform_indices = @transform_1, window_bounds = array<i64: 128, 384>}, {pipeline_mode = #tpu.pipeline_mode<synchronous>, transform_indices = @transform_2, window_bounds = array<i64: 1, 384>}, {pipeline_mode = #tpu.pipeline_mode<synchronous>, transform_indices = @transform_3, window_bounds = array<i64: 128, 128>}, {pipeline_mode = #tpu.pipeline_mode<synchronous>, transform_indices = @transform_4, window_bounds = array<i64: 1, 128>}, {transform_indices = @transform_5, window_bounds = array<i64: 16, 128>}]} {
    %c0_i32 = arith.constant 0 : i32
    %0 = arith.cmpi eq, %arg1, %c0_i32 : i32
    %1 = arith.extui %0 : i1 to i32
    %c0_i32_0 = arith.constant 0 : i32
    %2 = arith.cmpi ne, %1, %c0_i32_0 : i32
    scf.if %2 {
      %cst_38 = arith.constant 0.000000e+00 : f32
      %139 = vector.broadcast %cst_38 : f32 to vector<16x128xf32>
      %c0_39 = arith.constant 0 : index
      %c0_40 = arith.constant 0 : index
      %140 = vector.load %arg8[%c0_39, %c0_40] : memref<16x128xf32, #tpu.memory_space<vmem>>, vector<16x128xf32>
      tpu.vector_store %arg8[%c0_39, %c0_40], %139 {strides = array<i32>} : memref<16x128xf32, #tpu.memory_space<vmem>>, vector<16x128xf32>,
      %cst_41 = arith.constant 0.000000e+00 : f32
      %141 = vector.broadcast %cst_41 : f32 to vector<16x128xf32>
      %c0_42 = arith.constant 0 : index
      %c0_43 = arith.constant 0 : index
      %142 = vector.load %arg9[%c0_42, %c0_43] : memref<16x128xf32, #tpu.memory_space<vmem>>, vector<16x128xf32>
      tpu.vector_store %arg9[%c0_42, %c0_43], %141 {strides = array<i32>} : memref<16x128xf32, #tpu.memory_space<vmem>>, vector<16x128xf32>,
    } else {
    }
    %c0 = arith.constant 0 : index
    %c0_1 = arith.constant 0 : index
    %3 = vector.load %arg3[%c0, %c0_1] : memref<128x384xf32, #tpu.memory_space<vmem>>, vector<128x384xf32>
    %c0_2 = arith.constant 0 : index
    %c0_3 = arith.constant 0 : index
    %4 = vector.load %arg4[%c0_2, %c0_3] : memref<1x384xf32, #tpu.memory_space<vmem>>, vector<1x384xf32>
    %5 = vector.shape_cast %4 : vector<1x384xf32> to vector<1x384xf32>
    %6 = vector.broadcast %5 : vector<1x384xf32> to vector<16x384xf32>
    %c4_i32 = arith.constant 4 : i32
    %7 = arith.muli %arg1, %c4_i32 : i32
    %c0_4 = arith.constant 0 : index
    %c0_5 = arith.constant 0 : index
    %8 = vector.load %arg8[%c0_4, %c0_5] : memref<16x128xf32, #tpu.memory_space<vmem>>, vector<16x128xf32>
    %c0_6 = arith.constant 0 : index
    %c0_7 = arith.constant 0 : index
    %9 = vector.load %arg9[%c0_6, %c0_7] : memref<16x128xf32, #tpu.memory_space<vmem>>, vector<16x128xf32>
    %c0_i32_8 = arith.constant 0 : i32
    %10 = arith.index_cast %c0_i32_8 : i32 to index
    %c0_9 = arith.constant 0 : index
    %c0_10 = arith.constant 0 : index
    %11 = vector.load %arg2[%10, %c0_9, %c0_10] : memref<4x16x384xbf16, #tpu.memory_space<vmem>>, vector<1x16x384xbf16>
    %12 = vector.shape_cast %11 : vector<1x16x384xbf16> to vector<16x384xbf16>
    %13 = arith.extf %12 : vector<16x384xbf16> to vector<16x384xf32>
    %cst = arith.constant dense<0.000000e+00> : vector<16x384xf32>
    %14 = tpu.matmul %8, %3, %cst {dimension_numbers = #tpu.dot_dimension_numbers<[1], [0], [0], [1], [0, 0, 1, 1], [], []>} : vector<16x128xf32>, vector<128x384xf32>, vector<16x384xf32> -> vector<16x384xf32>
    %15 = arith.addf %14, %6 : vector<16x384xf32>
    %16 = vector.extract_strided_slice %13 {offsets = [0, 0], sizes = [16, 256], strides = [1, 1]} : vector<16x384xf32> to vector<16x256xf32>
    %17 = vector.extract_strided_slice %15 {offsets = [0, 0], sizes = [16, 256], strides = [1, 1]} : vector<16x384xf32> to vector<16x256xf32>
    %18 = arith.addf %16, %17 : vector<16x256xf32>
    %19 = arith.negf %18 : vector<16x256xf32>
    %20 = math.exp %19 : vector<16x256xf32>
    %cst_11 = arith.constant 1.000000e+00 : f32
    %21 = vector.broadcast %cst_11 : f32 to vector<16x256xf32>
    %22 = arith.addf %21, %20 : vector<16x256xf32>
    %23 = arith.divf %21, %22 : vector<16x256xf32>
    %24 = vector.extract_strided_slice %23 {offsets = [0, 0], sizes = [16, 128], strides = [1, 1]} : vector<16x256xf32> to vector<16x128xf32>
    %25 = vector.extract_strided_slice %23 {offsets = [0, 128], sizes = [16, 128], strides = [1, 1]} : vector<16x256xf32> to vector<16x128xf32>
    %26 = vector.extract_strided_slice %13 {offsets = [0, 256], sizes = [16, 128], strides = [1, 1]} : vector<16x384xf32> to vector<16x128xf32>
    %27 = vector.extract_strided_slice %15 {offsets = [0, 256], sizes = [16, 128], strides = [1, 1]} : vector<16x384xf32> to vector<16x128xf32>
    %28 = arith.mulf %24, %27 : vector<16x128xf32>
    %29 = arith.addf %26, %28 : vector<16x128xf32>
    %30 = math.tanh %29 : vector<16x128xf32>
    %cst_12 = arith.constant 1.000000e+00 : f32
    %31 = vector.broadcast %cst_12 : f32 to vector<16x128xf32>
    %32 = arith.subf %31, %25 : vector<16x128xf32>
    %33 = arith.mulf %32, %30 : vector<16x128xf32>
    %34 = arith.mulf %25, %8 : vector<16x128xf32>
    %35 = arith.addf %33, %34 : vector<16x128xf32>
    %36 = arith.addi %7, %c0_i32_8 : i32
    %c8_i32 = arith.constant 8 : i32
    %37 = arith.cmpi slt, %36, %c8_i32 : i32
    %38 = arith.select %37, %35, %8 : vector<16x128xf32>
    %39 = arith.addf %9, %35 : vector<16x128xf32>
    %40 = arith.select %37, %39, %9 : vector<16x128xf32>
    %c1_i32 = arith.constant 1 : i32
    %41 = arith.index_cast %c1_i32 : i32 to index
    %c0_13 = arith.constant 0 : index
    %c0_14 = arith.constant 0 : index
    %42 = vector.load %arg2[%41, %c0_13, %c0_14] : memref<4x16x384xbf16, #tpu.memory_space<vmem>>, vector<1x16x384xbf16>
    %43 = vector.shape_cast %42 : vector<1x16x384xbf16> to vector<16x384xbf16>
    %44 = arith.extf %43 : vector<16x384xbf16> to vector<16x384xf32>
    %cst_15 = arith.constant dense<0.000000e+00> : vector<16x384xf32>
    %45 = tpu.matmul %38, %3, %cst_15 {dimension_numbers = #tpu.dot_dimension_numbers<[1], [0], [0], [1], [0, 0, 1, 1], [], []>} : vector<16x128xf32>, vector<128x384xf32>, vector<16x384xf32> -> vector<16x384xf32>
    %46 = arith.addf %45, %6 : vector<16x384xf32>
    %47 = vector.extract_strided_slice %44 {offsets = [0, 0], sizes = [16, 256], strides = [1, 1]} : vector<16x384xf32> to vector<16x256xf32>
    %48 = vector.extract_strided_slice %46 {offsets = [0, 0], sizes = [16, 256], strides = [1, 1]} : vector<16x384xf32> to vector<16x256xf32>
    %49 = arith.addf %47, %48 : vector<16x256xf32>
    %50 = arith.negf %49 : vector<16x256xf32>
    %51 = math.exp %50 : vector<16x256xf32>
    %cst_16 = arith.constant 1.000000e+00 : f32
    %52 = vector.broadcast %cst_16 : f32 to vector<16x256xf32>
    %53 = arith.addf %52, %51 : vector<16x256xf32>
    %54 = arith.divf %52, %53 : vector<16x256xf32>
    %55 = vector.extract_strided_slice %54 {offsets = [0, 0], sizes = [16, 128], strides = [1, 1]} : vector<16x256xf32> to vector<16x128xf32>
    %56 = vector.extract_strided_slice %54 {offsets = [0, 128], sizes = [16, 128], strides = [1, 1]} : vector<16x256xf32> to vector<16x128xf32>
    %57 = vector.extract_strided_slice %44 {offsets = [0, 256], sizes = [16, 128], strides = [1, 1]} : vector<16x384xf32> to vector<16x128xf32>
    %58 = vector.extract_strided_slice %46 {offsets = [0, 256], sizes = [16, 128], strides = [1, 1]} : vector<16x384xf32> to vector<16x128xf32>
    %59 = arith.mulf %55, %58 : vector<16x128xf32>
    %60 = arith.addf %57, %59 : vector<16x128xf32>
    %61 = math.tanh %60 : vector<16x128xf32>
    %cst_17 = arith.constant 1.000000e+00 : f32
    %62 = vector.broadcast %cst_17 : f32 to vector<16x128xf32>
    %63 = arith.subf %62, %56 : vector<16x128xf32>
    %64 = arith.mulf %63, %61 : vector<16x128xf32>
    %65 = arith.mulf %56, %38 : vector<16x128xf32>
    %66 = arith.addf %64, %65 : vector<16x128xf32>
    %67 = arith.addi %7, %c1_i32 : i32
    %c8_i32_18 = arith.constant 8 : i32
    %68 = arith.cmpi slt, %67, %c8_i32_18 : i32
    %69 = arith.select %68, %66, %38 : vector<16x128xf32>
    %70 = arith.addf %40, %66 : vector<16x128xf32>
    %71 = arith.select %68, %70, %40 : vector<16x128xf32>
    %c2_i32 = arith.constant 2 : i32
    %72 = arith.index_cast %c2_i32 : i32 to index
    %c0_19 = arith.constant 0 : index
    %c0_20 = arith.constant 0 : index
    %73 = vector.load %arg2[%72, %c0_19, %c0_20] : memref<4x16x384xbf16, #tpu.memory_space<vmem>>, vector<1x16x384xbf16>
    %74 = vector.shape_cast %73 : vector<1x16x384xbf16> to vector<16x384xbf16>
    %75 = arith.extf %74 : vector<16x384xbf16> to vector<16x384xf32>
    %cst_21 = arith.constant dense<0.000000e+00> : vector<16x384xf32>
    %76 = tpu.matmul %69, %3, %cst_21 {dimension_numbers = #tpu.dot_dimension_numbers<[1], [0], [0], [1], [0, 0, 1, 1], [], []>} : vector<16x128xf32>, vector<128x384xf32>, vector<16x384xf32> -> vector<16x384xf32>
    %77 = arith.addf %76, %6 : vector<16x384xf32>
    %78 = vector.extract_strided_slice %75 {offsets = [0, 0], sizes = [16, 256], strides = [1, 1]} : vector<16x384xf32> to vector<16x256xf32>
    %79 = vector.extract_strided_slice %77 {offsets = [0, 0], sizes = [16, 256], strides = [1, 1]} : vector<16x384xf32> to vector<16x256xf32>
    %80 = arith.addf %78, %79 : vector<16x256xf32>
    %81 = arith.negf %80 : vector<16x256xf32>
    %82 = math.exp %81 : vector<16x256xf32>
    %cst_22 = arith.constant 1.000000e+00 : f32
    %83 = vector.broadcast %cst_22 : f32 to vector<16x256xf32>
    %84 = arith.addf %83, %82 : vector<16x256xf32>
    %85 = arith.divf %83, %84 : vector<16x256xf32>
    %86 = vector.extract_strided_slice %85 {offsets = [0, 0], sizes = [16, 128], strides = [1, 1]} : vector<16x256xf32> to vector<16x128xf32>
    %87 = vector.extract_strided_slice %85 {offsets = [0, 128], sizes = [16, 128], strides = [1, 1]} : vector<16x256xf32> to vector<16x128xf32>
    %88 = vector.extract_strided_slice %75 {offsets = [0, 256], sizes = [16, 128], strides = [1, 1]} : vector<16x384xf32> to vector<16x128xf32>
    %89 = vector.extract_strided_slice %77 {offsets = [0, 256], sizes = [16, 128], strides = [1, 1]} : vector<16x384xf32> to vector<16x128xf32>
    %90 = arith.mulf %86, %89 : vector<16x128xf32>
    %91 = arith.addf %88, %90 : vector<16x128xf32>
    %92 = math.tanh %91 : vector<16x128xf32>
    %cst_23 = arith.constant 1.000000e+00 : f32
    %93 = vector.broadcast %cst_23 : f32 to vector<16x128xf32>
    %94 = arith.subf %93, %87 : vector<16x128xf32>
    %95 = arith.mulf %94, %92 : vector<16x128xf32>
    %96 = arith.mulf %87, %69 : vector<16x128xf32>
    %97 = arith.addf %95, %96 : vector<16x128xf32>
    %98 = arith.addi %7, %c2_i32 : i32
    %c8_i32_24 = arith.constant 8 : i32
    %99 = arith.cmpi slt, %98, %c8_i32_24 : i32
    %100 = arith.select %99, %97, %69 : vector<16x128xf32>
    %101 = arith.addf %71, %97 : vector<16x128xf32>
    %102 = arith.select %99, %101, %71 : vector<16x128xf32>
    %c3_i32 = arith.constant 3 : i32
    %103 = arith.index_cast %c3_i32 : i32 to index
    %c0_25 = arith.constant 0 : index
    %c0_26 = arith.constant 0 : index
    %104 = vector.load %arg2[%103, %c0_25, %c0_26] : memref<4x16x384xbf16, #tpu.memory_space<vmem>>, vector<1x16x384xbf16>
    %105 = vector.shape_cast %104 : vector<1x16x384xbf16> to vector<16x384xbf16>
    %106 = arith.extf %105 : vector<16x384xbf16> to vector<16x384xf32>
    %cst_27 = arith.constant dense<0.000000e+00> : vector<16x384xf32>
    %107 = tpu.matmul %100, %3, %cst_27 {dimension_numbers = #tpu.dot_dimension_numbers<[1], [0], [0], [1], [0, 0, 1, 1], [], []>} : vector<16x128xf32>, vector<128x384xf32>, vector<16x384xf32> -> vector<16x384xf32>
    %108 = arith.addf %107, %6 : vector<16x384xf32>
    %109 = vector.extract_strided_slice %106 {offsets = [0, 0], sizes = [16, 256], strides = [1, 1]} : vector<16x384xf32> to vector<16x256xf32>
    %110 = vector.extract_strided_slice %108 {offsets = [0, 0], sizes = [16, 256], strides = [1, 1]} : vector<16x384xf32> to vector<16x256xf32>
    %111 = arith.addf %109, %110 : vector<16x256xf32>
    %112 = arith.negf %111 : vector<16x256xf32>
    %113 = math.exp %112 : vector<16x256xf32>
    %cst_28 = arith.constant 1.000000e+00 : f32
    %114 = vector.broadcast %cst_28 : f32 to vector<16x256xf32>
    %115 = arith.addf %114, %113 : vector<16x256xf32>
    %116 = arith.divf %114, %115 : vector<16x256xf32>
    %117 = vector.extract_strided_slice %116 {offsets = [0, 0], sizes = [16, 128], strides = [1, 1]} : vector<16x256xf32> to vector<16x128xf32>
    %118 = vector.extract_strided_slice %116 {offsets = [0, 128], sizes = [16, 128], strides = [1, 1]} : vector<16x256xf32> to vector<16x128xf32>
    %119 = vector.extract_strided_slice %106 {offsets = [0, 256], sizes = [16, 128], strides = [1, 1]} : vector<16x384xf32> to vector<16x128xf32>
    %120 = vector.extract_strided_slice %108 {offsets = [0, 256], sizes = [16, 128], strides = [1, 1]} : vector<16x384xf32> to vector<16x128xf32>
    %121 = arith.mulf %117, %120 : vector<16x128xf32>
    %122 = arith.addf %119, %121 : vector<16x128xf32>
    %123 = math.tanh %122 : vector<16x128xf32>
    %cst_29 = arith.constant 1.000000e+00 : f32
    %124 = vector.broadcast %cst_29 : f32 to vector<16x128xf32>
    %125 = arith.subf %124, %118 : vector<16x128xf32>
    %126 = arith.mulf %125, %123 : vector<16x128xf32>
    %127 = arith.mulf %118, %100 : vector<16x128xf32>
    %128 = arith.addf %126, %127 : vector<16x128xf32>
    %129 = arith.addi %7, %c3_i32 : i32
    %c8_i32_30 = arith.constant 8 : i32
    %130 = arith.cmpi slt, %129, %c8_i32_30 : i32
    %131 = arith.select %130, %128, %100 : vector<16x128xf32>
    %132 = arith.addf %102, %128 : vector<16x128xf32>
    %133 = arith.select %130, %132, %102 : vector<16x128xf32>
    %c4_i32_31 = arith.constant 4 : i32
    %c0_32 = arith.constant 0 : index
    %c0_33 = arith.constant 0 : index
    %134 = vector.load %arg8[%c0_32, %c0_33] : memref<16x128xf32, #tpu.memory_space<vmem>>, vector<16x128xf32>
    tpu.vector_store %arg8[%c0_32, %c0_33], %131 {strides = array<i32>} : memref<16x128xf32, #tpu.memory_space<vmem>>, vector<16x128xf32>,
    %c0_34 = arith.constant 0 : index
    %c0_35 = arith.constant 0 : index
    %135 = vector.load %arg9[%c0_34, %c0_35] : memref<16x128xf32, #tpu.memory_space<vmem>>, vector<16x128xf32>
    tpu.vector_store %arg9[%c0_34, %c0_35], %133 {strides = array<i32>} : memref<16x128xf32, #tpu.memory_space<vmem>>, vector<16x128xf32>,
    %c1_i32_36 = arith.constant 1 : i32
    %136 = arith.cmpi eq, %arg1, %c1_i32_36 : i32
    %137 = arith.extui %136 : i1 to i32
    %c0_i32_37 = arith.constant 0 : i32
    %138 = arith.cmpi ne, %137, %c0_i32_37 : i32
    scf.if %138 {
      %c0_38 = arith.constant 0 : index
      %c0_39 = arith.constant 0 : index
      %139 = vector.load %arg9[%c0_38, %c0_39] : memref<16x128xf32, #tpu.memory_space<vmem>>, vector<16x128xf32>
      %cst_40 = arith.constant 1.000000e+00 : f32
      %cst_41 = arith.constant 8.000000e+00 : f32
      %140 = arith.divf %cst_40, %cst_41 : f32
      %141 = vector.broadcast %140 : f32 to vector<16x128xf32>
      %142 = arith.mulf %139, %141 : vector<16x128xf32>
      %c0_42 = arith.constant 0 : index
      %c0_43 = arith.constant 0 : index
      %143 = vector.load %arg5[%c0_42, %c0_43] : memref<128x128xf32, #tpu.memory_space<vmem>>, vector<128x128xf32>
      %cst_44 = arith.constant dense<0.000000e+00> : vector<16x128xf32>
      %144 = tpu.matmul %142, %143, %cst_44 {dimension_numbers = #tpu.dot_dimension_numbers<[1], [0], [0], [1], [0, 0, 1, 1], [], []>} : vector<16x128xf32>, vector<128x128xf32>, vector<16x128xf32> -> vector<16x128xf32>
      %c0_45 = arith.constant 0 : index
      %c0_46 = arith.constant 0 : index
      %145 = vector.load %arg6[%c0_45, %c0_46] : memref<1x128xf32, #tpu.memory_space<vmem>>, vector<1x128xf32>
      %146 = vector.broadcast %145 : vector<1x128xf32> to vector<16x128xf32>
      %147 = arith.addf %144, %146 : vector<16x128xf32>
      %c0_47 = arith.constant 0 : index
      %c0_48 = arith.constant 0 : index
      %148 = vector.load %arg7[%c0_47, %c0_48] : memref<16x128xf32, #tpu.memory_space<vmem>>, vector<16x128xf32>
      tpu.vector_store %arg7[%c0_47, %c0_48], %147 {strides = array<i32>} : memref<16x128xf32, #tpu.memory_space<vmem>>, vector<16x128xf32>,
    } else {
    }
    return
  }
  func.func @transform_0(%arg0: i32, %arg1: i32) -> (i32, i32, i32) {
    %c0_i32 = arith.constant 0 : i32
    %c0_i32_0 = arith.constant 0 : i32
    return %arg1, %arg0, %c0_i32 : i32, i32, i32
  }
  func.func @transform_1(%arg0: i32, %arg1: i32) -> (i32, i32) {
    %c0_i32 = arith.constant 0 : i32
    %c0_i32_0 = arith.constant 0 : i32
    %c0_i32_1 = arith.constant 0 : i32
    return %c0_i32, %c0_i32_0 : i32, i32
  }
  func.func @transform_2(%arg0: i32, %arg1: i32) -> (i32, i32) {
    %c0_i32 = arith.constant 0 : i32
    %c0_i32_0 = arith.constant 0 : i32
    %c0_i32_1 = arith.constant 0 : i32
    return %c0_i32, %c0_i32_0 : i32, i32
  }
  func.func @transform_3(%arg0: i32, %arg1: i32) -> (i32, i32) {
    %c0_i32 = arith.constant 0 : i32
    %c0_i32_0 = arith.constant 0 : i32
    %c0_i32_1 = arith.constant 0 : i32
    return %c0_i32, %c0_i32_0 : i32, i32
  }
  func.func @transform_4(%arg0: i32, %arg1: i32) -> (i32, i32) {
    %c0_i32 = arith.constant 0 : i32
    %c0_i32_0 = arith.constant 0 : i32
    %c0_i32_1 = arith.constant 0 : i32
    return %c0_i32, %c0_i32_0 : i32, i32
  }
  func.func @transform_5(%arg0: i32, %arg1: i32) -> (i32, i32) {
    %c0_i32 = arith.constant 0 : i32
    %c0_i32_0 = arith.constant 0 : i32
    return %arg0, %c0_i32 : i32, i32
  }
}

</mosaic_0001>

<llo_original>
// kernel: tpu_custom_call.1
$region0: #{tpu_custom_call.1}
  #allocation0 [shape = 'u32[]', space=smem, size = 0x4, offset = 0x4, fixed_abs, tag = 'smem constant byte address 0x4 - core index']
  #allocation1 [shape = 'u32[144,128]{1,0:T(1,128)}', space=vmem, size = 0x12000, scoped, tag = 'internal scratch']
  #allocation2 [shape = 'f32[16,128]{1,0:T(8,128)}', space=vmem, size = 0x2000, scoped, tag = 'scratch operand']
  #allocation3 [shape = 'f32[16,128]{1,0:T(8,128)}', space=vmem, size = 0x2000, scoped, tag = 'scratch operand']
  %s0 = inlined_call_operand.hbm [shape: bf16[8,16,384], index: 0, kind: input, shape index: {}]
  %s1 = inlined_call_operand.hbm [shape: f32[128,384], index: 1, kind: input, shape index: {}]
  %s2 = inlined_call_operand.vmem [shape: f32[1,384], index: 2, kind: input, shape index: {}]
  %s3 = inlined_call_operand.hbm [shape: f32[128,128], index: 3, kind: input, shape index: {}]
  %s4 = inlined_call_operand.vmem [shape: f32[1,128], index: 4, kind: input, shape index: {}]
  %s5 = inlined_call_operand.hbm [shape: f32[16,128], index: 5, kind: output, shape index: {}]
  %s6 = sld [smem:[#allocation0]]
  $region73: #{tpu_custom_call.1} parent=0
    _
  %s8 = ssub.s32 1, %s6
  %s9 = scalar_select 0, %s8, %s6
  $region1: #{tpu_custom_call.1} parent=0
    #allocation4 [shape = 'u8[98304]{0}', space=vmem, size = 0x18000, scoped, tag = 'input window, operand 0']
    #allocation5 [shape = 's32[2]{0}', space=sflag, size = 0x8, scoped, tag = 'scoped memory for tpu_custom_call.1']
    #allocation6 [shape = 's32[2]{0}', space=sflag, size = 0x8, scoped, tag = 'scoped memory for tpu_custom_call.1']
    #allocation7 [shape = 'u8[196608]{0}', space=vmem, size = 0x30000, scoped, tag = 'input window, operand 1, single buffered']
    #allocation8 [shape = 's32[1]{0}', space=sflag, size = 0x4, scoped, tag = 'scoped memory for tpu_custom_call.1']
    #allocation9 [shape = 'u8[65536]{0}', space=vmem, size = 0x10000, scoped, tag = 'input window, operand 3, single buffered']
    #allocation10 [shape = 'u8[8192]{0}', space=vmem, size = 0x2000, scoped, tag = 'output window, operand 0, single buffered']
    %10 = vsyncpa [#allocation5], 0
    %s11 = scalar_lea.sflag [#allocation5], 1
    %12 = vsyncpa %s11, 0
    %13 = vsyncpa [#allocation8], 0
    %14 = vsyncpa [#allocation6], 0
    loop: start=0, step=1, limit=4
    $region2: #{tpu_custom_call.1} parent=1 // loop_pre_header
      _
    $region3: #{tpu_custom_call.1} parent=1 // loop_header
      %s16 = sphi 0, %s20
      %p17 = scmp.ge.s32.totalorder %s16, 4
      %s23 = sphi 0, %s35
      %s24 = sphi 0, %s31
      %s25 = sphi 0, %s23
      %s26 = sphi 0, %s24
      %s27 = sphi 0, %s25
      %s28 = sphi 0, %s26
      %s40 = sphi 0, %s42
      %s43 = sphi 0, %s40
      %s44 = sphi 0, %s43
      %s60 = sphi 0, %s44
      %s64 = sphi 0, %s64
      %s66 = sphi 0, %s64
      %s67 = sphi 0, %s66
      %s81 = sphi 0, %s67
      %s85 = sphi 0, %s85
      %s87 = sphi 0, %s85
      %s88 = sphi 0, %s87
      %s102 = sphi 0, %s88
      %s106 = sphi 0, %s106
      %s108 = sphi 0, %s106
      %s109 = sphi 0, %s108
      %s123 = sphi 0, %s109
      %s127 = sphi 0, %s127
      %s129 = sphi 0, %s127
      %s130 = sphi 0, %s129
      %s144 = sphi 0, %s130
      %s150 = sphi 0, %s152
      %s153 = sphi 0, %s150
      %s154 = sphi 0, %s153
      %s170 = sphi 0, %s154
    $region4: #{tpu_custom_call.1} parent=1 // loop_header_branch
      %19 = sbr.rel (%p17) target = $region8
    $region5: #{tpu_custom_call.1} parent=1 // loop_body
      %s21 = ssub.s32 %s16, 1
      %s22 = ssub.s32 %s16, 2
      %s29 = sadd.s32 1, %s24
      %p30 = scmp.ge.s32.totalorder %s29, 2
      %s31 = scalar_select %p30, 0, %s29
      %s32 = sadd.s32 1, %s23
      %s33 = scalar_select %p30, %s32, %s23
      %p34 = scmp.ge.s32.totalorder %s33, 1
      %s35 = scalar_select %p34, 0, %s33
      %s36 = ssub.s32 %s24, %s31
      %s37 = ssub.s32 %s23, %s35
      %s38 = sor.u32 %s36, %s37
      %p39 = scmp.eq.s32.totalorder %s38, 0
      %s41 = sadd.s32 %s40, 1
      %s42 = scalar_select %p39, %s40, %s41
      %p45 = pneg %p39
      %p46 = scmp.eq.s32.totalorder %s16, 1
      %p47 = por %p45, %p46
      %p48 = scmp.ne.s32.totalorder %s40, %s43
      %p49 = scmp.eq.s32.totalorder %s16, 0
      %p50 = por %p48, %p49
      %p51 = scmp.ne.s32.totalorder %s40, %s43
      %p52 = scmp.eq.s32.totalorder %s21, 1
      %p53 = por %p51, %p52
      %p54 = scmp.ne.s32.totalorder %s43, %s44
      %p55 = scmp.eq.s32.totalorder %s21, 0
      %p56 = por %p54, %p55
      %p57 = scmp.ne.s32.totalorder %s43, %s44
      %p58 = scmp.eq.s32.totalorder %s22, 1
      %p59 = por %p57, %p58
      %p61 = scmp.ne.s32.totalorder %s44, %s60
      %p62 = scmp.eq.s32.totalorder %s22, 0
      %p63 = por %p61, %p62
      %s65 = sadd.s32 %s64, 1
      %p68 = scmp.eq.s32.totalorder %s16, 1
      %p69 = scmp.ne.s32.totalorder %s64, %s66
      %p70 = scmp.eq.s32.totalorder %s16, 0
      %p71 = por %p69, %p70
      %p72 = scmp.ne.s32.totalorder %s64, %s66
      %p73 = scmp.eq.s32.totalorder %s21, 1
      %p74 = por %p72, %p73
      %p75 = scmp.ne.s32.totalorder %s66, %s67
      %p76 = scmp.eq.s32.totalorder %s21, 0
      %p77 = por %p75, %p76
      %p78 = scmp.ne.s32.totalorder %s66, %s67
      %p79 = scmp.eq.s32.totalorder %s22, 1
      %p80 = por %p78, %p79
      %p82 = scmp.ne.s32.totalorder %s67, %s81
      %p83 = scmp.eq.s32.totalorder %s22, 0
      %p84 = por %p82, %p83
      %s86 = sadd.s32 %s85, 1
      %p89 = scmp.eq.s32.totalorder %s16, 1
      %p90 = scmp.ne.s32.totalorder %s85, %s87
      %p91 = scmp.eq.s32.totalorder %s16, 0
      %p92 = por %p90, %p91
      %p93 = scmp.ne.s32.totalorder %s85, %s87
      %p94 = scmp.eq.s32.totalorder %s21, 1
      %p95 = por %p93, %p94
      %p96 = scmp.ne.s32.totalorder %s87, %s88
      %p97 = scmp.eq.s32.totalorder %s21, 0
      %p98 = por %p96, %p97
      %p99 = scmp.ne.s32.totalorder %s87, %s88
      %p100 = scmp.eq.s32.totalorder %s22, 1
      %p101 = por %p99, %p100
      %p103 = scmp.ne.s32.totalorder %s88, %s102
      %p104 = scmp.eq.s32.totalorder %s22, 0
      %p105 = por %p103, %p104
      %s107 = sadd.s32 %s106, 1
      %p110 = scmp.eq.s32.totalorder %s16, 1
      %p111 = scmp.ne.s32.totalorder %s106, %s108
      %p112 = scmp.eq.s32.totalorder %s16, 0
      %p113 = por %p111, %p112
      %p114 = scmp.ne.s32.totalorder %s106, %s108
      %p115 = scmp.eq.s32.totalorder %s21, 1
      %p116 = por %p114, %p115
      %p117 = scmp.ne.s32.totalorder %s108, %s109
      %p118 = scmp.eq.s32.totalorder %s21, 0
      %p119 = por %p117, %p118
      %p120 = scmp.ne.s32.totalorder %s108, %s109
      %p121 = scmp.eq.s32.totalorder %s22, 1
      %p122 = por %p120, %p121
      %p124 = scmp.ne.s32.totalorder %s109, %s123
      %p125 = scmp.eq.s32.totalorder %s22, 0
      %p126 = por %p124, %p125
      %s128 = sadd.s32 %s127, 1
      %p131 = scmp.eq.s32.totalorder %s16, 1
      %p132 = scmp.ne.s32.totalorder %s127, %s129
      %p133 = scmp.eq.s32.totalorder %s16, 0
      %p134 = por %p132, %p133
      %p135 = scmp.ne.s32.totalorder %s127, %s129
      %p136 = scmp.eq.s32.totalorder %s21, 1
      %p137 = por %p135, %p136
      %p138 = scmp.ne.s32.totalorder %s129, %s130
      %p139 = scmp.eq.s32.totalorder %s21, 0
      %p140 = por %p138, %p139
      %p141 = scmp.ne.s32.totalorder %s129, %s130
      %p142 = scmp.eq.s32.totalorder %s22, 1
      %p143 = por %p141, %p142
      %p145 = scmp.ne.s32.totalorder %s130, %s144
      %p146 = scmp.eq.s32.totalorder %s22, 0
      %p147 = por %p145, %p146
      %s148 = ssub.s32 %s23, %s35
      %p149 = scmp.eq.s32.totalorder %s148, 0
      %s151 = sadd.s32 %s150, 1
      %s152 = scalar_select %p149, %s150, %s151
      %p155 = pneg %p149
      %p156 = scmp.eq.s32.totalorder %s16, 1
      %p157 = por %p155, %p156
      %p158 = scmp.ne.s32.totalorder %s150, %s153
      %p159 = scmp.eq.s32.totalorder %s16, 0
      %p160 = por %p158, %p159
      %p161 = scmp.ne.s32.totalorder %s150, %s153
      %p162 = scmp.eq.s32.totalorder %s21, 1
      %p163 = por %p161, %p162
      %p164 = scmp.ne.s32.totalorder %s153, %s154
      %p165 = scmp.eq.s32.totalorder %s21, 0
      %p166 = por %p164, %p165
      %p167 = scmp.ne.s32.totalorder %s153, %s154
      %p168 = scmp.eq.s32.totalorder %s22, 1
      %p169 = por %p167, %p168
      %p171 = scmp.ne.s32.totalorder %s154, %s170
      %p172 = scmp.eq.s32.totalorder %s22, 0
      %p173 = por %p171, %p172
      %p174 = scmp.le.s32.totalorder 1, %s16
      %p175 = scmp.lt.s32.totalorder %s16, 3
      %p176 = pnand %p174, %p175
      %p177 = pneg %p176
      // Predicated region
      $region9: #{tpu_custom_call.1} parent=5 // pred_check
        _
      $region10: #{tpu_custom_call.1} parent=5 // pred_check_branch
        %179 = sbr.rel (%p176) target = $region12
      $region11: #{tpu_custom_call.1} parent=5 // pred_region
        %s180 = ssub.s32 %s16, 1
        // Predicated region
        $region13: #{tpu_custom_call.1} parent=11 // pred_check
          %p181 = pneg %p77
        $region14: #{tpu_custom_call.1} parent=11 // pred_check_branch
          %183 = sbr.rel (%p181) target = $region16
        $region15: #{tpu_custom_call.1} parent=11 // pred_region
          %s185 = ssub.s32 6144, 6144
          %186 = vsyncadd [#allocation8], %s185
          %s187 = sshll.u32 [#allocation7], 4
          %s188 = int_to_ptr.vmem [resolvable:$true] %s187
          %193 = dma.hbm_to_vmem [thread:$0]  %s1, 6144, %s188, [#allocation8], 384, 384, 24
        $region16: #{tpu_custom_call.1} parent=11 // pred_fallthru
          _
        // Predicated region
        $region17: #{tpu_custom_call.1} parent=11 // pred_check
          %p194 = pneg %p98
        $region18: #{tpu_custom_call.1} parent=11 // pred_check_branch
          %196 = sbr.rel (%p194) target = $region20
        $region19: #{tpu_custom_call.1} parent=11 // pred_region
          _
        $region20: #{tpu_custom_call.1} parent=11 // pred_fallthru
          _
        // Predicated region
        $region21: #{tpu_custom_call.1} parent=11 // pred_check
          %p197 = pneg %p119
        $region22: #{tpu_custom_call.1} parent=11 // pred_check_branch
          %199 = sbr.rel (%p197) target = $region24
        $region23: #{tpu_custom_call.1} parent=11 // pred_region
          %s201 = ssub.s32 2048, 2048
          %202 = vsyncadd [#allocation8], %s201
          %s203 = sshll.u32 [#allocation9], 4
          %s204 = int_to_ptr.vmem [resolvable:$true] %s203
          %209 = dma.hbm_to_vmem [thread:$0]  %s3, 2048, %s204, [#allocation8], 128, 128, 8
        $region24: #{tpu_custom_call.1} parent=11 // pred_fallthru
          _
        // Predicated region
        $region25: #{tpu_custom_call.1} parent=11 // pred_check
          %p210 = pneg %p140
        $region26: #{tpu_custom_call.1} parent=11 // pred_check_branch
          %212 = sbr.rel (%p210) target = $region28
        $region27: #{tpu_custom_call.1} parent=11 // pred_region
          _
        $region28: #{tpu_custom_call.1} parent=11 // pred_fallthru
          _
      $region12: #{tpu_custom_call.1} parent=5 // pred_fallthru
        _
      %p213 = scmp.lt.s32.totalorder %s16, 2
      // Predicated region
      $region29: #{tpu_custom_call.1} parent=5 // pred_check
        %p214 = pneg %p213
      $region30: #{tpu_custom_call.1} parent=5 // pred_check_branch
        %216 = sbr.rel (%p214) target = $region32
      $region31: #{tpu_custom_call.1} parent=5 // pred_region
        // Predicated region
        $region33: #{tpu_custom_call.1} parent=31 // pred_check
          %p217 = pneg %p50
        $region34: #{tpu_custom_call.1} parent=31 // pred_check_branch
          %219 = sbr.rel (%p217) target = $region36
        $region35: #{tpu_custom_call.1} parent=31 // pred_region
          %s220 = sand.u32 %s40, 1
          %s221 = scalar_lea.sflag [#allocation5], %s220
          %s222 = sand.u32 %s40, 1
          %s223 = smul.addr %s222, 96
          %s224 = scalar_lea.vmem [#allocation4], %s223
          %s225 = smul.u32 4, %s24
          %s226 = smul.u32 2, %s23
          %s228 = ssub.s32 1536, 1536
          %229 = vsyncadd %s221, %s228
          %s230 = smul.addr %s226, 3
          %s231 = smul.addr %s225, 6
          %s232 = sadd.s32 %s230, %s231
          %s233 = smul.addr %s232, 64
          %s234 = scalar_lea.hbm %s0, %s233
          %s235 = sshll.u32 %s224, 4
          %s236 = int_to_ptr.vmem [resolvable:$true] %s235
          %241 = dma.hbm_to_vmem [thread:$0]  %s234, 1536, %s236, %s221, 192, 192, 12
        $region36: #{tpu_custom_call.1} parent=31 // pred_fallthru
          _
      $region32: #{tpu_custom_call.1} parent=5 // pred_fallthru
        _
      %p242 = scmp.le.s32.totalorder 1, %s16
      %p243 = scmp.lt.s32.totalorder %s16, 3
      %p244 = pnand %p242, %p243
      %p245 = pneg %p244
      // Predicated region
      $region37: #{tpu_custom_call.1} parent=5 // pred_check
        _
      $region38: #{tpu_custom_call.1} parent=5 // pred_check_branch
        %247 = sbr.rel (%p244) target = $region40
      $region39: #{tpu_custom_call.1} parent=5 // pred_region
        %s248 = ssub.s32 %s16, 1
        %s249 = sand.u32 %s43, 1
        %s250 = scalar_lea.sflag [#allocation5], %s249
        %s251 = sand.u32 %s43, 1
        %s252 = smul.addr %s251, 96
        %s253 = scalar_lea.vmem [#allocation4], %s252
        // Predicated region
        $region41: #{tpu_custom_call.1} parent=39 // pred_check
          %p254 = pneg %p56
        $region42: #{tpu_custom_call.1} parent=39 // pred_check_branch
          %256 = sbr.rel (%p254) target = $region44
        $region43: #{tpu_custom_call.1} parent=39 // pred_region
          %257 = dma.done %s250, 1536
        $region44: #{tpu_custom_call.1} parent=39 // pred_fallthru
          _
        // Predicated region
        $region45: #{tpu_custom_call.1} parent=39 // pred_check
          %p258 = pneg %p77
        $region46: #{tpu_custom_call.1} parent=39 // pred_check_branch
          %260 = sbr.rel (%p258) target = $region48
        $region47: #{tpu_custom_call.1} parent=39 // pred_region
          %261 = dma.done [#allocation8], 6144
        $region48: #{tpu_custom_call.1} parent=39 // pred_fallthru
          _
        // Predicated region
        $region49: #{tpu_custom_call.1} parent=39 // pred_check
          %p262 = pneg %p119
        $region50: #{tpu_custom_call.1} parent=39 // pred_check_branch
          %264 = sbr.rel (%p262) target = $region52
        $region51: #{tpu_custom_call.1} parent=39 // pred_region
          %265 = dma.done [#allocation8], 2048
        $region52: #{tpu_custom_call.1} parent=39 // pred_fallthru
          _
        %s266 = sand.u32 %s43, 1
        %s267 = scalar_lea.sflag [#allocation5], %s266
        %s268 = sand.u32 %s43, 1
        %s269 = smul.addr %s268, 96
        %s270 = scalar_lea.vmem [#allocation4], %s269
        %p271 = pneg %p56
        %p272 = pneg %p53
        %p273 = pneg %p77
        %p274 = pneg %p74
        %p275 = pneg %p98
        %p276 = pneg %p95
        %p277 = pneg %p119
        %p278 = pneg %p116
        %p279 = pneg %p140
        %p280 = pneg %p137
        %p281 = pneg %p166
        %p282 = pneg %p163
        %s283 = smul.u32 4, %s26
        %s284 = smul.u32 2, %s25
        %s285 = smul.u32 2, %s25
        %p286 = scmp.eq.s32.totalorder %s26, 0
        // Predicated region
        $region53: #{tpu_custom_call.1} parent=39 // pred_check
          %p287 = pneg %p286
        $region54: #{tpu_custom_call.1} parent=39 // pred_check_branch
          %289 = sbr.rel (%p287) target = $region56
        $region55: #{tpu_custom_call.1} parent=39 // pred_region
          %290 = vst [vmem:[#allocation2] sm:$0xff] 0.0
          %291 = vst [vmem:[#allocation2 + $0x8] sm:$0xff] 0.0
          %292 = vst [vmem:[#allocation3] sm:$0xff] 0.0
          %293 = vst [vmem:[#allocation3 + $0x8] sm:$0xff] 0.0
        $region56: #{tpu_custom_call.1} parent=39 // pred_fallthru
          _
        %v294 = vld [vmem:[#allocation7] sm:$0xff]
        %v295 = vld [vmem:[#allocation7 + $0x8] sm:$0xff]
        %v296 = vld [vmem:[#allocation7 + $0x10] sm:$0xff]
        %v297 = vld [vmem:[#allocation7 + $0x18] sm:$0xff]
        %v298 = vld [vmem:[#allocation7 + $0x20] sm:$0xff]
        %v299 = vld [vmem:[#allocation7 + $0x28] sm:$0xff]
        %v300 = vld [vmem:[#allocation7 + $0x30] sm:$0xff]
        %v301 = vld [vmem:[#allocation7 + $0x38] sm:$0xff]
        %v302 = vld [vmem:[#allocation7 + $0x40] sm:$0xff]
        %v303 = vld [vmem:[#allocation7 + $0x48] sm:$0xff]
        %v304 = vld [vmem:[#allocation7 + $0x50] sm:$0xff]
        %v305 = vld [vmem:[#allocation7 + $0x58] sm:$0xff]
        %v306 = vld [vmem:[#allocation7 + $0x60] sm:$0xff]
        %v307 = vld [vmem:[#allocation7 + $0x68] sm:$0xff]
        %v308 = vld [vmem:[#allocation7 + $0x70] sm:$0xff]
        %v309 = vld [vmem:[#allocation7 + $0x78] sm:$0xff]
        %v310 = vld [vmem:[#allocation7 + $0x80] sm:$0xff]
        %v311 = vld [vmem:[#allocation7 + $0x88] sm:$0xff]
        %v312 = vld [vmem:[#allocation7 + $0x90] sm:$0xff]
        %v313 = vld [vmem:[#allocation7 + $0x98] sm:$0xff]
        %v314 = vld [vmem:[#allocation7 + $0xa0] sm:$0xff]
        %v315 = vld [vmem:[#allocation7 + $0xa8] sm:$0xff]
        %v316 = vld [vmem:[#allocation7 + $0xb0] sm:$0xff]
        %v317 = vld [vmem:[#allocation7 + $0xb8] sm:$0xff]
        %v318 = vld [vmem:[#allocation7 + $0xc0] sm:$0xff]
        %v319 = vld [vmem:[#allocation7 + $0xc8] sm:$0xff]
        %v320 = vld [vmem:[#allocation7 + $0xd0] sm:$0xff]
        %v321 = vld [vmem:[#allocation7 + $0xd8] sm:$0xff]
        %v322 = vld [vmem:[#allocation7 + $0xe0] sm:$0xff]
        %v323 = vld [vmem:[#allocation7 + $0xe8] sm:$0xff]
        %v324 = vld [vmem:[#allocation7 + $0xf0] sm:$0xff]
        %v325 = vld [vmem:[#allocation7 + $0xf8] sm:$0xff]
        %v326 = vld [vmem:[#allocation7 + $0x100] sm:$0xff]
        %v327 = vld [vmem:[#allocation7 + $0x108] sm:$0xff]
        %v328 = vld [vmem:[#allocation7 + $0x110] sm:$0xff]
        %v329 = vld [vmem:[#allocation7 + $0x118] sm:$0xff]
        %v330 = vld [vmem:[#allocation7 + $0x120] sm:$0xff]
        %v331 = vld [vmem:[#allocation7 + $0x128] sm:$0xff]
        %v332 = vld [vmem:[#allocation7 + $0x130] sm:$0xff]
        %v333 = vld [vmem:[#allocation7 + $0x138] sm:$0xff]
        %v334 = vld [vmem:[#allocation7 + $0x140] sm:$0xff]
        %v335 = vld [vmem:[#allocation7 + $0x148] sm:$0xff]
        %v336 = vld [vmem:[#allocation7 + $0x150] sm:$0xff]
        %v337 = vld [vmem:[#allocation7 + $0x158] sm:$0xff]
        %v338 = vld [vmem:[#allocation7 + $0x160] sm:$0xff]
        %v339 = vld [vmem:[#allocation7 + $0x168] sm:$0xff]
        %v340 = vld [vmem:[#allocation7 + $0x170] sm:$0xff]
        %v341 = vld [vmem:[#allocation7 + $0x178] sm:$0xff]
        %v342 = vld [vmem:[%s2] sm:$0x7]
        %v344 = vlaneseq
        %v345 = vshrl.u32 %v344, 7
        %v346 = vsub.s32 0, %v345
        %v347 = vrot.slane %v342, %v346
        %v348 = vlaneseq
        %v349 = vshrl.u32 %v348, 7
        %v350 = vsub.s32 1, %v349
        %v351 = vrot.slane %v342, %v350
        %v352 = vlaneseq
        %v353 = vshrl.u32 %v352, 7
        %v354 = vsub.s32 2, %v353
        %v355 = vrot.slane %v342, %v354
        %s359 = smul.u32 %s26, 4
        %v360 = vld [vmem:[#allocation2] sm:$0xff]
        %v361 = vld [vmem:[#allocation2 + $0x8] sm:$0xff]
        %v362 = vld [vmem:[#allocation3] sm:$0xff]
        %v363 = vld [vmem:[#allocation3 + $0x8] sm:$0xff]
        %v364 = vld [vmem:[%s253] sm:$0xff]
        %v365 = vld [vmem:[%s253 + $0x8] sm:$0xf]
        %v366 = vld [vmem:[%s253 + $0xc] sm:$0xff]
        %v367 = vld [vmem:[%s253 + $0x14] sm:$0xf]
        %v368 = vunpack.c.l.bf16 %v364
        %v369 = vunpack.c.h.bf16 %v364
        %v370 = vunpack.c.l.bf16 %v365
        %v371 = vunpack.c.l.bf16 %v366
        %v372 = vunpack.c.h.bf16 %v366
        %v373 = vunpack.c.l.bf16 %v367
        %374 = vmatprep.subr.mxu0 %v295
        %375 = vmatpush1.msra.mxu0 %v294
        %376 = vmatprep.subr.mxu0 %v298
        %377 = vmatpush1.msra.mxu0 %v297
        %378 = vmatprep.subr.mxu0 %v301
        %379 = vmatpush1.msra.mxu0 %v300
        %380 = vmatprep.subr.mxu0 %v304
        %381 = vmatpush1.msra.mxu0 %v303
        %382 = vmatprep.subr.mxu0 %v307
        %383 = vmatpush1.msra.mxu0 %v306
        %384 = vmatprep.subr.mxu0 %v310
        %385 = vmatpush1.msra.mxu0 %v309
        %386 = vmatprep.subr.mxu0 %v313
        %387 = vmatpush1.msra.mxu0 %v312
        %388 = vmatprep.subr.mxu0 %v316
        %389 = vmatpush1.msra.mxu0 %v315
        %390 = vmatprep.subr.mxu0 %v319
        %391 = vmatpush1.msra.mxu0 %v318
        %392 = vmatprep.subr.mxu0 %v322
        %393 = vmatpush1.msra.mxu0 %v321
        %394 = vmatprep.subr.mxu0 %v325
        %395 = vmatpush1.msra.mxu0 %v324
        %396 = vmatprep.subr.mxu0 %v328
        %397 = vmatpush1.msra.mxu0 %v327
        %398 = vmatprep.subr.mxu0 %v331
        %399 = vmatpush1.msra.mxu0 %v330
        %400 = vmatprep.subr.mxu0 %v334
        %401 = vmatpush1.msra.mxu0 %v333
        %402 = vmatprep.subr.mxu0 %v337
        %403 = vmatpush1.msra.mxu0 %v336
        %404 = vmatprep.subr.mxu0 %v340
        %405 = vmatpush1.msra.mxu0 %v339
        %406 = vmatprep.subr.mxu0 0.0
        %407 = vmatpush1.msra.mxu0 0.0
        %408 = vmatprep.subr.mxu0 0.0
        %409 = vmatpush1.msra.mxu0 0.0
        %410 = vmatprep.subr.mxu0 0.0
        %411 = vmatpush1.msra.mxu0 0.0
        %412 = vmatprep.subr.mxu0 0.0
        %413 = vmatpush1.msra.mxu0 0.0
        %414 = vmatprep.subr.mxu0 0.0
        %415 = vmatpush1.msra.mxu0 0.0
        %416 = vmatprep.subr.mxu0 0.0
        %417 = vmatpush1.msra.mxu0 0.0
        %418 = vmatprep.subr.mxu0 0.0
        %419 = vmatpush1.msra.mxu0 0.0
        %420 = vmatprep.subr.mxu0 0.0
        %421 = vmatpush1.msra.mxu0 0.0
        %422 = vmatprep.subr.mxu0 0.0
        %423 = vmatpush1.msra.mxu0 0.0
        %424 = vmatprep.subr.mxu0 0.0
        %425 = vmatpush1.msra.mxu0 0.0
        %426 = vmatprep.subr.mxu0 0.0
        %427 = vmatpush1.msra.mxu0 0.0
        %428 = vmatprep.subr.mxu0 0.0
        %429 = vmatpush1.msra.mxu0 0.0
        %430 = vmatprep.subr.mxu0 0.0
        %431 = vmatpush1.msra.mxu0 0.0
        %432 = vmatprep.subr.mxu0 0.0
        %433 = vmatpush1.msra.mxu0 0.0
        %434 = vmatprep.subr.mxu0 0.0
        %435 = vmatpush1.msra.mxu0 0.0
        %436 = vmatprep.subr.mxu0 0.0
        %437 = vmatpush1.msra.mxu0 0.0
        %438 = vmatprep.mubr.f32.mxu0 0.0
        %439 = vmatmul.mubr.f32.gmra.mrb[0].mxu0 %v360
        %v440 = vpop.f32.mrb[0].mxu0
        %v441 = vadd.f32 %v347, %v440
        %v442 = vpop.f32.mrb[0].mxu0
        %v443 = vadd.f32 %v351, %v442
        %444 = vmatprep.mubr.f32.mxu0 0.0
        %445 = vmatmul.mubr.f32.gmra.mrb[0].mxu0 %v361
        %v446 = vpop.f32.mrb[0].mxu0
        %v447 = vadd.f32 %v347, %v446
        %v448 = vpop.f32.mrb[0].mxu0
        %v449 = vadd.f32 %v351, %v448
        %450 = vdwg.mxu0
        %451 = vmatprep.subr.mxu0 0.0
        %452 = vmatpush1.msra.mxu0 %v296
        %453 = vmatprep.subr.mxu0 0.0
        %454 = vmatpush1.msra.mxu0 %v299
        %455 = vmatprep.subr.mxu0 0.0
        %456 = vmatpush1.msra.mxu0 %v302
        %457 = vmatprep.subr.mxu0 0.0
        %458 = vmatpush1.msra.mxu0 %v305
        %459 = vmatprep.subr.mxu0 0.0
        %460 = vmatpush1.msra.mxu0 %v308
        %461 = vmatprep.subr.mxu0 0.0
        %462 = vmatpush1.msra.mxu0 %v311
        %463 = vmatprep.subr.mxu0 0.0
        %464 = vmatpush1.msra.mxu0 %v314
        %465 = vmatprep.subr.mxu0 0.0
        %466 = vmatpush1.msra.mxu0 %v317
        %467 = vmatprep.subr.mxu0 0.0
        %468 = vmatpush1.msra.mxu0 %v320
        %469 = vmatprep.subr.mxu0 0.0
        %470 = vmatpush1.msra.mxu0 %v323
        %471 = vmatprep.subr.mxu0 0.0
        %472 = vmatpush1.msra.mxu0 %v326
        %473 = vmatprep.subr.mxu0 0.0
        %474 = vmatpush1.msra.mxu0 %v329
        %475 = vmatprep.subr.mxu0 0.0
        %476 = vmatpush1.msra.mxu0 %v332
        %477 = vmatprep.subr.mxu0 0.0
        %478 = vmatpush1.msra.mxu0 %v335
        %479 = vmatprep.subr.mxu0 0.0
        %480 = vmatpush1.msra.mxu0 %v338
        %481 = vmatprep.subr.mxu0 0.0
        %482 = vmatpush1.msra.mxu0 %v341
        %483 = vmatprep.subr.mxu0 0.0
        %484 = vmatpush1.msra.mxu0 0.0
        %485 = vmatprep.subr.mxu0 0.0
        %486 = vmatpush1.msra.mxu0 0.0
        %487 = vmatprep.subr.mxu0 0.0
        %488 = vmatpush1.msra.mxu0 0.0
        %489 = vmatprep.subr.mxu0 0.0
        %490 = vmatpush1.msra.mxu0 0.0
        %491 = vmatprep.subr.mxu0 0.0
        %492 = vmatpush1.msra.mxu0 0.0
        %493 = vmatprep.subr.mxu0 0.0
        %494 = vmatpush1.msra.mxu0 0.0
        %495 = vmatprep.subr.mxu0 0.0
        %496 = vmatpush1.msra.mxu0 0.0
        %497 = vmatprep.subr.mxu0 0.0
        %498 = vmatpush1.msra.mxu0 0.0
        %499 = vmatprep.subr.mxu0 0.0
        %500 = vmatpush1.msra.mxu0 0.0
        %501 = vmatprep.subr.mxu0 0.0
        %502 = vmatpush1.msra.mxu0 0.0
        %503 = vmatprep.subr.mxu0 0.0
        %504 = vmatpush1.msra.mxu0 0.0
        %505 = vmatprep.subr.mxu0 0.0
        %506 = vmatpush1.msra.mxu0 0.0
        %507 = vmatprep.subr.mxu0 0.0
        %508 = vmatpush1.msra.mxu0 0.0
        %509 = vmatprep.subr.mxu0 0.0
        %510 = vmatpush1.msra.mxu0 0.0
        %511 = vmatprep.subr.mxu0 0.0
        %512 = vmatpush1.msra.mxu0 0.0
        %513 = vmatprep.subr.mxu0 0.0
        %514 = vmatpush1.msra.mxu0 0.0
        %515 = vmatprep.mubr.f32.mxu0 0.0
        %516 = vmatmul.mubr.f32.gmra.mrb[0].mxu0 %v360
        %v517 = vpop.f32.mrb[0].mxu0
        %v518 = vadd.f32 %v355, %v517
        %v519 = vpop.f32.mrb[0].mxu0
        %520 = vmatprep.mubr.f32.mxu0 0.0
        %521 = vmatmul.mubr.f32.gmra.mrb[0].mxu0 %v361
        %v522 = vpop.f32.mrb[0].mxu0
        %v523 = vadd.f32 %v355, %v522
        %v524 = vpop.f32.mrb[0].mxu0
        %525 = vdwg.mxu0
        %v526 = vadd.f32 %v368, %v441
        %v527 = vadd.f32 %v369, %v443
        %v528 = vadd.f32 %v371, %v447
        %v529 = vadd.f32 %v372, %v449
        %v530 = vxor.u32 %v526, 2147483648
        %v531 = vxor.u32 %v527, 2147483648
        %v532 = vxor.u32 %v528, 2147483648
        %v533 = vxor.u32 %v529, 2147483648
        %v534 = vmul.f32 %v530, 1.442695
        %v535 = vpow.pop %v534
        %v536 = vmul.f32 %v531, 1.442695
        %v537 = vpow.pop %v536
        %v538 = vmul.f32 %v532, 1.442695
        %v539 = vpow.pop %v538
        %v540 = vmul.f32 %v533, 1.442695
        %v541 = vpow.pop %v540
        %v542 = vadd.f32 %v535, 1.0
        %v543 = vadd.f32 %v537, 1.0
        %v544 = vadd.f32 %v539, 1.0
        %v545 = vadd.f32 %v541, 1.0
        %v546 = vrcp.pop %v542
        %v547 = vmul.f32 1.0, %v546
        %v548 = vrcp.pop %v543
        %v549 = vmul.f32 1.0, %v548
        %v550 = vrcp.pop %v544
        %v551 = vmul.f32 1.0, %v550
        %v552 = vrcp.pop %v545
        %v553 = vmul.f32 1.0, %v552
        %v554 = vmul.f32 %v547, %v518
        %v555 = vmul.f32 %v551, %v523
        %v556 = vadd.f32 %v370, %v554
        %v557 = vadd.f32 %v373, %v555
        %v558 = vtanh.pop %v556
        %v559 = vtanh.pop %v557
        %v560 = vsub.f32 1.0, %v549
        %v561 = vsub.f32 1.0, %v553
        %v562 = vmul.f32 %v560, %v558
        %v563 = vmul.f32 %v561, %v559
        %v564 = vmul.f32 %v549, %v360
        %v565 = vmul.f32 %v553, %v361
        %v566 = vadd.f32 %v562, %v564
        %v567 = vadd.f32 %v563, %v565
        %p568 = scmp.lt.s32.totalorder %s359, 8
        %s569 = scalar_select %p568, 1, 0
        %v570 = vstv %s569
        %vm571 = vcmp.eq.s32.totalorder %v570, 1
        %v572 = vsel %vm571, %v566, %v360
        %v573 = vsel %vm571, %v567, %v361
        %v574 = vadd.f32 %v362, %v566
        %v575 = vadd.f32 %v363, %v567
        %v576 = vsel %vm571, %v574, %v362
        %v577 = vsel %vm571, %v575, %v363
        %s578 = scalar_lea.vmem %s253, 24 [#allocation4]
        %v579 = vld [vmem:[%s578] sm:$0xff]
        %v580 = vld [vmem:[%s578 + $0x8] sm:$0xf]
        %v581 = vld [vmem:[%s578 + $0xc] sm:$0xff]
        %v582 = vld [vmem:[%s578 + $0x14] sm:$0xf]
        %v583 = vunpack.c.l.bf16 %v579
        %v584 = vunpack.c.h.bf16 %v579
        %v585 = vunpack.c.l.bf16 %v580
        %v586 = vunpack.c.l.bf16 %v581
        %v587 = vunpack.c.h.bf16 %v581
        %v588 = vunpack.c.l.bf16 %v582
        %589 = vmatprep.subr.mxu0 %v295
        %590 = vmatpush1.msra.mxu0 %v294
        %591 = vmatprep.subr.mxu0 %v298
        %592 = vmatpush1.msra.mxu0 %v297
        %593 = vmatprep.subr.mxu0 %v301
        %594 = vmatpush1.msra.mxu0 %v300
        %595 = vmatprep.subr.mxu0 %v304
        %596 = vmatpush1.msra.mxu0 %v303
        %597 = vmatprep.subr.mxu0 %v307
        %598 = vmatpush1.msra.mxu0 %v306
        %599 = vmatprep.subr.mxu0 %v310
        %600 = vmatpush1.msra.mxu0 %v309
        %601 = vmatprep.subr.mxu0 %v313
        %602 = vmatpush1.msra.mxu0 %v312
        %603 = vmatprep.subr.mxu0 %v316
        %604 = vmatpush1.msra.mxu0 %v315
        %605 = vmatprep.subr.mxu0 %v319
        %606 = vmatpush1.msra.mxu0 %v318
        %607 = vmatprep.subr.mxu0 %v322
        %608 = vmatpush1.msra.mxu0 %v321
        %609 = vmatprep.subr.mxu0 %v325
        %610 = vmatpush1.msra.mxu0 %v324
        %611 = vmatprep.subr.mxu0 %v328
        %612 = vmatpush1.msra.mxu0 %v327
        %613 = vmatprep.subr.mxu0 %v331
        %614 = vmatpush1.msra.mxu0 %v330
        %615 = vmatprep.subr.mxu0 %v334
        %616 = vmatpush1.msra.mxu0 %v333
        %617 = vmatprep.subr.mxu0 %v337
        %618 = vmatpush1.msra.mxu0 %v336
        %619 = vmatprep.subr.mxu0 %v340
        %620 = vmatpush1.msra.mxu0 %v339
        %621 = vmatprep.subr.mxu0 0.0
        %622 = vmatpush1.msra.mxu0 0.0
        %623 = vmatprep.subr.mxu0 0.0
        %624 = vmatpush1.msra.mxu0 0.0
        %625 = vmatprep.subr.mxu0 0.0
        %626 = vmatpush1.msra.mxu0 0.0
        %627 = vmatprep.subr.mxu0 0.0
        %628 = vmatpush1.msra.mxu0 0.0
        %629 = vmatprep.subr.mxu0 0.0
        %630 = vmatpush1.msra.mxu0 0.0
        %631 = vmatprep.subr.mxu0 0.0
        %632 = vmatpush1.msra.mxu0 0.0
        %633 = vmatprep.subr.mxu0 0.0
        %634 = vmatpush1.msra.mxu0 0.0
        %635 = vmatprep.subr.mxu0 0.0
        %636 = vmatpush1.msra.mxu0 0.0
        %637 = vmatprep.subr.mxu0 0.0
        %638 = vmatpush1.msra.mxu0 0.0
        %639 = vmatprep.subr.mxu0 0.0
        %640 = vmatpush1.msra.mxu0 0.0
        %641 = vmatprep.subr.mxu0 0.0
        %642 = vmatpush1.msra.mxu0 0.0
        %643 = vmatprep.subr.mxu0 0.0
        %644 = vmatpush1.msra.mxu0 0.0
        %645 = vmatprep.subr.mxu0 0.0
        %646 = vmatpush1.msra.mxu0 0.0
        %647 = vmatprep.subr.mxu0 0.0
        %648 = vmatpush1.msra.mxu0 0.0
        %649 = vmatprep.subr.mxu0 0.0
        %650 = vmatpush1.msra.mxu0 0.0
        %651 = vmatprep.subr.mxu0 0.0
        %652 = vmatpush1.msra.mxu0 0.0
        %653 = vmatprep.mubr.f32.mxu0 0.0
        %654 = vmatmul.mubr.f32.gmra.mrb[0].mxu0 %v572
        %v655 = vpop.f32.mrb[0].mxu0
        %v656 = vadd.f32 %v347, %v655
        %v657 = vpop.f32.mrb[0].mxu0
        %v658 = vadd.f32 %v351, %v657
        %659 = vmatprep.mubr.f32.mxu0 0.0
        %660 = vmatmul.mubr.f32.gmra.mrb[0].mxu0 %v573
        %v661 = vpop.f32.mrb[0].mxu0
        %v662 = vadd.f32 %v347, %v661
        %v663 = vpop.f32.mrb[0].mxu0
        %v664 = vadd.f32 %v351, %v663
        %665 = vdwg.mxu0
        %666 = vmatprep.subr.mxu0 0.0
        %667 = vmatpush1.msra.mxu0 %v296
        %668 = vmatprep.subr.mxu0 0.0
        %669 = vmatpush1.msra.mxu0 %v299
        %670 = vmatprep.subr.mxu0 0.0
        %671 = vmatpush1.msra.mxu0 %v302
        %672 = vmatprep.subr.mxu0 0.0
        %673 = vmatpush1.msra.mxu0 %v305
        %674 = vmatprep.subr.mxu0 0.0
        %675 = vmatpush1.msra.mxu0 %v308
        %676 = vmatprep.subr.mxu0 0.0
        %677 = vmatpush1.msra.mxu0 %v311
        %678 = vmatprep.subr.mxu0 0.0
        %679 = vmatpush1.msra.mxu0 %v314
        %680 = vmatprep.subr.mxu0 0.0
        %681 = vmatpush1.msra.mxu0 %v317
        %682 = vmatprep.subr.mxu0 0.0
        %683 = vmatpush1.msra.mxu0 %v320
        %684 = vmatprep.subr.mxu0 0.0
        %685 = vmatpush1.msra.mxu0 %v323
        %686 = vmatprep.subr.mxu0 0.0
        %687 = vmatpush1.msra.mxu0 %v326
        %688 = vmatprep.subr.mxu0 0.0
        %689 = vmatpush1.msra.mxu0 %v329
        %690 = vmatprep.subr.mxu0 0.0
        %691 = vmatpush1.msra.mxu0 %v332
        %692 = vmatprep.subr.mxu0 0.0
        %693 = vmatpush1.msra.mxu0 %v335
        %694 = vmatprep.subr.mxu0 0.0
        %695 = vmatpush1.msra.mxu0 %v338
        %696 = vmatprep.subr.mxu0 0.0
        %697 = vmatpush1.msra.mxu0 %v341
        %698 = vmatprep.subr.mxu0 0.0
        %699 = vmatpush1.msra.mxu0 0.0
        %700 = vmatprep.subr.mxu0 0.0
        %701 = vmatpush1.msra.mxu0 0.0
        %702 = vmatprep.subr.mxu0 0.0
        %703 = vmatpush1.msra.mxu0 0.0
        %704 = vmatprep.subr.mxu0 0.0
        %705 = vmatpush1.msra.mxu0 0.0
        %706 = vmatprep.subr.mxu0 0.0
        %707 = vmatpush1.msra.mxu0 0.0
        %708 = vmatprep.subr.mxu0 0.0
        %709 = vmatpush1.msra.mxu0 0.0
        %710 = vmatprep.subr.mxu0 0.0
        %711 = vmatpush1.msra.mxu0 0.0
        %712 = vmatprep.subr.mxu0 0.0
        %713 = vmatpush1.msra.mxu0 0.0
        %714 = vmatprep.subr.mxu0 0.0
        %715 = vmatpush1.msra.mxu0 0.0
        %716 = vmatprep.subr.mxu0 0.0
        %717 = vmatpush1.msra.mxu0 0.0
        %718 = vmatprep.subr.mxu0 0.0
        %719 = vmatpush1.msra.mxu0 0.0
        %720 = vmatprep.subr.mxu0 0.0
        %721 = vmatpush1.msra.mxu0 0.0
        %722 = vmatprep.subr.mxu0 0.0
        %723 = vmatpush1.msra.mxu0 0.0
        %724 = vmatprep.subr.mxu0 0.0
        %725 = vmatpush1.msra.mxu0 0.0
        %726 = vmatprep.subr.mxu0 0.0
        %727 = vmatpush1.msra.mxu0 0.0
        %728 = vmatprep.subr.mxu0 0.0
        %729 = vmatpush1.msra.mxu0 0.0
        %730 = vmatprep.mubr.f32.mxu0 0.0
        %731 = vmatmul.mubr.f32.gmra.mrb[0].mxu0 %v572
        %v732 = vpop.f32.mrb[0].mxu0
        %v733 = vadd.f32 %v355, %v732
        %v734 = vpop.f32.mrb[0].mxu0
        %735 = vmatprep.mubr.f32.mxu0 0.0
        %736 = vmatmul.mubr.f32.gmra.mrb[0].mxu0 %v573
        %v737 = vpop.f32.mrb[0].mxu0
        %v738 = vadd.f32 %v355, %v737
        %v739 = vpop.f32.mrb[0].mxu0
        %740 = vdwg.mxu0
        %v741 = vadd.f32 %v583, %v656
        %v742 = vadd.f32 %v584, %v658
        %v743 = vadd.f32 %v586, %v662
        %v744 = vadd.f32 %v587, %v664
        %v745 = vxor.u32 %v741, 2147483648
        %v746 = vxor.u32 %v742, 2147483648
        %v747 = vxor.u32 %v743, 2147483648
        %v748 = vxor.u32 %v744, 2147483648
        %v749 = vmul.f32 %v745, 1.442695
        %v750 = vpow.pop %v749
        %v751 = vmul.f32 %v746, 1.442695
        %v752 = vpow.pop %v751
        %v753 = vmul.f32 %v747, 1.442695
        %v754 = vpow.pop %v753
        %v755 = vmul.f32 %v748, 1.442695
        %v756 = vpow.pop %v755
        %v757 = vadd.f32 %v750, 1.0
        %v758 = vadd.f32 %v752, 1.0
        %v759 = vadd.f32 %v754, 1.0
        %v760 = vadd.f32 %v756, 1.0
        %v761 = vrcp.pop %v757
        %v762 = vmul.f32 1.0, %v761
        %v763 = vrcp.pop %v758
        %v764 = vmul.f32 1.0, %v763
        %v765 = vrcp.pop %v759
        %v766 = vmul.f32 1.0, %v765
        %v767 = vrcp.pop %v760
        %v768 = vmul.f32 1.0, %v767
        %v769 = vmul.f32 %v762, %v733
        %v770 = vmul.f32 %v766, %v738
        %v771 = vadd.f32 %v585, %v769
        %v772 = vadd.f32 %v588, %v770
        %v773 = vtanh.pop %v771
        %v774 = vtanh.pop %v772
        %v775 = vsub.f32 1.0, %v764
        %v776 = vsub.f32 1.0, %v768
        %v777 = vmul.f32 %v775, %v773
        %v778 = vmul.f32 %v776, %v774
        %v779 = vmul.f32 %v764, %v572
        %v780 = vmul.f32 %v768, %v573
        %v781 = vadd.f32 %v777, %v779
        %v782 = vadd.f32 %v778, %v780
        %s783 = sadd.s32 %s359, 1
        %p784 = scmp.lt.s32.totalorder %s783, 8
        %s785 = scalar_select %p784, 1, 0
        %v786 = vstv %s785
        %vm787 = vcmp.eq.s32.totalorder %v786, 1
        %v788 = vsel %vm787, %v781, %v572
        %v789 = vsel %vm787, %v782, %v573
        %v790 = vadd.f32 %v576, %v781
        %v791 = vadd.f32 %v577, %v782
        %v792 = vsel %vm787, %v790, %v576
        %v793 = vsel %vm787, %v791, %v577
        %s794 = scalar_lea.vmem %s253, 48 [#allocation4]
        %v795 = vld [vmem:[%s794] sm:$0xff]
        %v796 = vld [vmem:[%s794 + $0x8] sm:$0xf]
        %v797 = vld [vmem:[%s794 + $0xc] sm:$0xff]
        %v798 = vld [vmem:[%s794 + $0x14] sm:$0xf]
        %v799 = vunpack.c.l.bf16 %v795
        %v800 = vunpack.c.h.bf16 %v795
        %v801 = vunpack.c.l.bf16 %v796
        %v802 = vunpack.c.l.bf16 %v797
        %v803 = vunpack.c.h.bf16 %v797
        %v804 = vunpack.c.l.bf16 %v798
        %805 = vmatprep.subr.mxu0 %v295
        %806 = vmatpush1.msra.mxu0 %v294
        %807 = vmatprep.subr.mxu0 %v298
        %808 = vmatpush1.msra.mxu0 %v297
        %809 = vmatprep.subr.mxu0 %v301
        %810 = vmatpush1.msra.mxu0 %v300
        %811 = vmatprep.subr.mxu0 %v304
        %812 = vmatpush1.msra.mxu0 %v303
        %813 = vmatprep.subr.mxu0 %v307
        %814 = vmatpush1.msra.mxu0 %v306
        %815 = vmatprep.subr.mxu0 %v310
        %816 = vmatpush1.msra.mxu0 %v309
        %817 = vmatprep.subr.mxu0 %v313
        %818 = vmatpush1.msra.mxu0 %v312
        %819 = vmatprep.subr.mxu0 %v316
        %820 = vmatpush1.msra.mxu0 %v315
        %821 = vmatprep.subr.mxu0 %v319
        %822 = vmatpush1.msra.mxu0 %v318
        %823 = vmatprep.subr.mxu0 %v322
        %824 = vmatpush1.msra.mxu0 %v321
        %825 = vmatprep.subr.mxu0 %v325
        %826 = vmatpush1.msra.mxu0 %v324
        %827 = vmatprep.subr.mxu0 %v328
        %828 = vmatpush1.msra.mxu0 %v327
        %829 = vmatprep.subr.mxu0 %v331
        %830 = vmatpush1.msra.mxu0 %v330
        %831 = vmatprep.subr.mxu0 %v334
        %832 = vmatpush1.msra.mxu0 %v333
        %833 = vmatprep.subr.mxu0 %v337
        %834 = vmatpush1.msra.mxu0 %v336
        %835 = vmatprep.subr.mxu0 %v340
        %836 = vmatpush1.msra.mxu0 %v339
        %837 = vmatprep.subr.mxu0 0.0
        %838 = vmatpush1.msra.mxu0 0.0
        %839 = vmatprep.subr.mxu0 0.0
        %840 = vmatpush1.msra.mxu0 0.0
        %841 = vmatprep.subr.mxu0 0.0
        %842 = vmatpush1.msra.mxu0 0.0
        %843 = vmatprep.subr.mxu0 0.0
        %844 = vmatpush1.msra.mxu0 0.0
        %845 = vmatprep.subr.mxu0 0.0
        %846 = vmatpush1.msra.mxu0 0.0
        %847 = vmatprep.subr.mxu0 0.0
        %848 = vmatpush1.msra.mxu0 0.0
        %849 = vmatprep.subr.mxu0 0.0
        %850 = vmatpush1.msra.mxu0 0.0
        %851 = vmatprep.subr.mxu0 0.0
        %852 = vmatpush1.msra.mxu0 0.0
        %853 = vmatprep.subr.mxu0 0.0
        %854 = vmatpush1.msra.mxu0 0.0
        %855 = vmatprep.subr.mxu0 0.0
        %856 = vmatpush1.msra.mxu0 0.0
        %857 = vmatprep.subr.mxu0 0.0
        %858 = vmatpush1.msra.mxu0 0.0
        %859 = vmatprep.subr.mxu0 0.0
        %860 = vmatpush1.msra.mxu0 0.0
        %861 = vmatprep.subr.mxu0 0.0
        %862 = vmatpush1.msra.mxu0 0.0
        %863 = vmatprep.subr.mxu0 0.0
        %864 = vmatpush1.msra.mxu0 0.0
        %865 = vmatprep.subr.mxu0 0.0
        %866 = vmatpush1.msra.mxu0 0.0
        %867 = vmatprep.subr.mxu0 0.0
        %868 = vmatpush1.msra.mxu0 0.0
        %869 = vmatprep.mubr.f32.mxu0 0.0
        %870 = vmatmul.mubr.f32.gmra.mrb[0].mxu0 %v788
        %v871 = vpop.f32.mrb[0].mxu0
        %v872 = vadd.f32 %v347, %v871
        %v873 = vpop.f32.mrb[0].mxu0
        %v874 = vadd.f32 %v351, %v873
        %875 = vmatprep.mubr.f32.mxu0 0.0
        %876 = vmatmul.mubr.f32.gmra.mrb[0].mxu0 %v789
        %v877 = vpop.f32.mrb[0].mxu0
        %v878 = vadd.f32 %v347, %v877
        %v879 = vpop.f32.mrb[0].mxu0
        %v880 = vadd.f32 %v351, %v879
        %881 = vdwg.mxu0
        %882 = vmatprep.subr.mxu0 0.0
        %883 = vmatpush1.msra.mxu0 %v296
        %884 = vmatprep.subr.mxu0 0.0
        %885 = vmatpush1.msra.mxu0 %v299
        %886 = vmatprep.subr.mxu0 0.0
        %887 = vmatpush1.msra.mxu0 %v302
        %888 = vmatprep.subr.mxu0 0.0
        %889 = vmatpush1.msra.mxu0 %v305
        %890 = vmatprep.subr.mxu0 0.0
        %891 = vmatpush1.msra.mxu0 %v308
        %892 = vmatprep.subr.mxu0 0.0
        %893 = vmatpush1.msra.mxu0 %v311
        %894 = vmatprep.subr.mxu0 0.0
        %895 = vmatpush1.msra.mxu0 %v314
        %896 = vmatprep.subr.mxu0 0.0
        %897 = vmatpush1.msra.mxu0 %v317
        %898 = vmatprep.subr.mxu0 0.0
        %899 = vmatpush1.msra.mxu0 %v320
        %900 = vmatprep.subr.mxu0 0.0
        %901 = vmatpush1.msra.mxu0 %v323
        %902 = vmatprep.subr.mxu0 0.0
        %903 = vmatpush1.msra.mxu0 %v326
        %904 = vmatprep.subr.mxu0 0.0
        %905 = vmatpush1.msra.mxu0 %v329
        %906 = vmatprep.subr.mxu0 0.0
        %907 = vmatpush1.msra.mxu0 %v332
        %908 = vmatprep.subr.mxu0 0.0
        %909 = vmatpush1.msra.mxu0 %v335
        %910 = vmatprep.subr.mxu0 0.0
        %911 = vmatpush1.msra.mxu0 %v338
        %912 = vmatprep.subr.mxu0 0.0
        %913 = vmatpush1.msra.mxu0 %v341
        %914 = vmatprep.subr.mxu0 0.0
        %915 = vmatpush1.msra.mxu0 0.0
        %916 = vmatprep.subr.mxu0 0.0
        %917 = vmatpush1.msra.mxu0 0.0
        %918 = vmatprep.subr.mxu0 0.0
        %919 = vmatpush1.msra.mxu0 0.0
        %920 = vmatprep.subr.mxu0 0.0
        %921 = vmatpush1.msra.mxu0 0.0
        %922 = vmatprep.subr.mxu0 0.0
        %923 = vmatpush1.msra.mxu0 0.0
        %924 = vmatprep.subr.mxu0 0.0
        %925 = vmatpush1.msra.mxu0 0.0
        %926 = vmatprep.subr.mxu0 0.0
        %927 = vmatpush1.msra.mxu0 0.0
        %928 = vmatprep.subr.mxu0 0.0
        %929 = vmatpush1.msra.mxu0 0.0
        %930 = vmatprep.subr.mxu0 0.0
        %931 = vmatpush1.msra.mxu0 0.0
        %932 = vmatprep.subr.mxu0 0.0
        %933 = vmatpush1.msra.mxu0 0.0
        %934 = vmatprep.subr.mxu0 0.0
        %935 = vmatpush1.msra.mxu0 0.0
        %936 = vmatprep.subr.mxu0 0.0
        %937 = vmatpush1.msra.mxu0 0.0
        %938 = vmatprep.subr.mxu0 0.0
        %939 = vmatpush1.msra.mxu0 0.0
        %940 = vmatprep.subr.mxu0 0.0
        %941 = vmatpush1.msra.mxu0 0.0
        %942 = vmatprep.subr.mxu0 0.0
        %943 = vmatpush1.msra.mxu0 0.0
        %944 = vmatprep.subr.mxu0 0.0
        %945 = vmatpush1.msra.mxu0 0.0
        %946 = vmatprep.mubr.f32.mxu0 0.0
        %947 = vmatmul.mubr.f32.gmra.mrb[0].mxu0 %v788
        %v948 = vpop.f32.mrb[0].mxu0
        %v949 = vadd.f32 %v355, %v948
        %v950 = vpop.f32.mrb[0].mxu0
        %951 = vmatprep.mubr.f32.mxu0 0.0
        %952 = vmatmul.mubr.f32.gmra.mrb[0].mxu0 %v789
        %v953 = vpop.f32.mrb[0].mxu0
        %v954 = vadd.f32 %v355, %v953
        %v955 = vpop.f32.mrb[0].mxu0
        %956 = vdwg.mxu0
        %v957 = vadd.f32 %v799, %v872
        %v958 = vadd.f32 %v800, %v874
        %v959 = vadd.f32 %v802, %v878
        %v960 = vadd.f32 %v803, %v880
        %v961 = vxor.u32 %v957, 2147483648
        %v962 = vxor.u32 %v958, 2147483648
        %v963 = vxor.u32 %v959, 2147483648
        %v964 = vxor.u32 %v960, 2147483648
        %v965 = vmul.f32 %v961, 1.442695
        %v966 = vpow.pop %v965
        %v967 = vmul.f32 %v962, 1.442695
        %v968 = vpow.pop %v967
        %v969 = vmul.f32 %v963, 1.442695
        %v970 = vpow.pop %v969
        %v971 = vmul.f32 %v964, 1.442695
        %v972 = vpow.pop %v971
        %v973 = vadd.f32 %v966, 1.0
        %v974 = vadd.f32 %v968, 1.0
        %v975 = vadd.f32 %v970, 1.0
        %v976 = vadd.f32 %v972, 1.0
        %v977 = vrcp.pop %v973
        %v978 = vmul.f32 1.0, %v977
        %v979 = vrcp.pop %v974
        %v980 = vmul.f32 1.0, %v979
        %v981 = vrcp.pop %v975
        %v982 = vmul.f32 1.0, %v981
        %v983 = vrcp.pop %v976
        %v984 = vmul.f32 1.0, %v983
        %v985 = vmul.f32 %v978, %v949
        %v986 = vmul.f32 %v982, %v954
        %v987 = vadd.f32 %v801, %v985
        %v988 = vadd.f32 %v804, %v986
        %v989 = vtanh.pop %v987
        %v990 = vtanh.pop %v988
        %v991 = vsub.f32 1.0, %v980
        %v992 = vsub.f32 1.0, %v984
        %v993 = vmul.f32 %v991, %v989
        %v994 = vmul.f32 %v992, %v990
        %v995 = vmul.f32 %v980, %v788
        %v996 = vmul.f32 %v984, %v789
        %v997 = vadd.f32 %v993, %v995
        %v998 = vadd.f32 %v994, %v996
        %s999 = sadd.s32 %s359, 2
        %p1000 = scmp.lt.s32.totalorder %s999, 8
        %s1001 = scalar_select %p1000, 1, 0
        %v1002 = vstv %s1001
        %vm1003 = vcmp.eq.s32.totalorder %v1002, 1
        %v1004 = vsel %vm1003, %v997, %v788
        %v1005 = vsel %vm1003, %v998, %v789
        %v1006 = vadd.f32 %v792, %v997
        %v1007 = vadd.f32 %v793, %v998
        %v1008 = vsel %vm1003, %v1006, %v792
        %v1009 = vsel %vm1003, %v1007, %v793
        %s1010 = scalar_lea.vmem %s253, 72 [#allocation4]
        %v1011 = vld [vmem:[%s1010] sm:$0xff]
        %v1012 = vld [vmem:[%s1010 + $0x8] sm:$0xf]
        %v1013 = vld [vmem:[%s1010 + $0xc] sm:$0xff]
        %v1014 = vld [vmem:[%s1010 + $0x14] sm:$0xf]
        %v1015 = vunpack.c.l.bf16 %v1011
        %v1016 = vunpack.c.h.bf16 %v1011
        %v1017 = vunpack.c.l.bf16 %v1012
        %v1018 = vunpack.c.l.bf16 %v1013
        %v1019 = vunpack.c.h.bf16 %v1013
        %v1020 = vunpack.c.l.bf16 %v1014
        %1021 = vmatprep.subr.mxu0 %v295
        %1022 = vmatpush1.msra.mxu0 %v294
        %1023 = vmatprep.subr.mxu0 %v298
        %1024 = vmatpush1.msra.mxu0 %v297
        %1025 = vmatprep.subr.mxu0 %v301
        %1026 = vmatpush1.msra.mxu0 %v300
        %1027 = vmatprep.subr.mxu0 %v304
        %1028 = vmatpush1.msra.mxu0 %v303
        %1029 = vmatprep.subr.mxu0 %v307
        %1030 = vmatpush1.msra.mxu0 %v306
        %1031 = vmatprep.subr.mxu0 %v310
        %1032 = vmatpush1.msra.mxu0 %v309
        %1033 = vmatprep.subr.mxu0 %v313
        %1034 = vmatpush1.msra.mxu0 %v312
        %1035 = vmatprep.subr.mxu0 %v316
        %1036 = vmatpush1.msra.mxu0 %v315
        %1037 = vmatprep.subr.mxu0 %v319
        %1038 = vmatpush1.msra.mxu0 %v318
        %1039 = vmatprep.subr.mxu0 %v322
        %1040 = vmatpush1.msra.mxu0 %v321
        %1041 = vmatprep.subr.mxu0 %v325
        %1042 = vmatpush1.msra.mxu0 %v324
        %1043 = vmatprep.subr.mxu0 %v328
        %1044 = vmatpush1.msra.mxu0 %v327
        %1045 = vmatprep.subr.mxu0 %v331
        %1046 = vmatpush1.msra.mxu0 %v330
        %1047 = vmatprep.subr.mxu0 %v334
        %1048 = vmatpush1.msra.mxu0 %v333
        %1049 = vmatprep.subr.mxu0 %v337
        %1050 = vmatpush1.msra.mxu0 %v336
        %1051 = vmatprep.subr.mxu0 %v340
        %1052 = vmatpush1.msra.mxu0 %v339
        %1053 = vmatprep.subr.mxu0 0.0
        %1054 = vmatpush1.msra.mxu0 0.0
        %1055 = vmatprep.subr.mxu0 0.0
        %1056 = vmatpush1.msra.mxu0 0.0
        %1057 = vmatprep.subr.mxu0 0.0
        %1058 = vmatpush1.msra.mxu0 0.0
        %1059 = vmatprep.subr.mxu0 0.0
        %1060 = vmatpush1.msra.mxu0 0.0
        %1061 = vmatprep.subr.mxu0 0.0
        %1062 = vmatpush1.msra.mxu0 0.0
        %1063 = vmatprep.subr.mxu0 0.0
        %1064 = vmatpush1.msra.mxu0 0.0
        %1065 = vmatprep.subr.mxu0 0.0
        %1066 = vmatpush1.msra.mxu0 0.0
        %1067 = vmatprep.subr.mxu0 0.0
        %1068 = vmatpush1.msra.mxu0 0.0
        %1069 = vmatprep.subr.mxu0 0.0
        %1070 = vmatpush1.msra.mxu0 0.0
        %1071 = vmatprep.subr.mxu0 0.0
        %1072 = vmatpush1.msra.mxu0 0.0
        %1073 = vmatprep.subr.mxu0 0.0
        %1074 = vmatpush1.msra.mxu0 0.0
        %1075 = vmatprep.subr.mxu0 0.0
        %1076 = vmatpush1.msra.mxu0 0.0
        %1077 = vmatprep.subr.mxu0 0.0
        %1078 = vmatpush1.msra.mxu0 0.0
        %1079 = vmatprep.subr.mxu0 0.0
        %1080 = vmatpush1.msra.mxu0 0.0
        %1081 = vmatprep.subr.mxu0 0.0
        %1082 = vmatpush1.msra.mxu0 0.0
        %1083 = vmatprep.subr.mxu0 0.0
        %1084 = vmatpush1.msra.mxu0 0.0
        %1085 = vmatprep.mubr.f32.mxu0 0.0
        %1086 = vmatmul.mubr.f32.gmra.mrb[0].mxu0 %v1004
        %v1087 = vpop.f32.mrb[0].mxu0
        %v1088 = vadd.f32 %v347, %v1087
        %v1089 = vpop.f32.mrb[0].mxu0
        %v1090 = vadd.f32 %v351, %v1089
        %1091 = vmatprep.mubr.f32.mxu0 0.0
        %1092 = vmatmul.mubr.f32.gmra.mrb[0].mxu0 %v1005
        %v1093 = vpop.f32.mrb[0].mxu0
        %v1094 = vadd.f32 %v347, %v1093
        %v1095 = vpop.f32.mrb[0].mxu0
        %v1096 = vadd.f32 %v351, %v1095
        %1097 = vdwg.mxu0
        %1098 = vmatprep.subr.mxu0 0.0
        %1099 = vmatpush1.msra.mxu0 %v296
        %1100 = vmatprep.subr.mxu0 0.0
        %1101 = vmatpush1.msra.mxu0 %v299
        %1102 = vmatprep.subr.mxu0 0.0
        %1103 = vmatpush1.msra.mxu0 %v302
        %1104 = vmatprep.subr.mxu0 0.0
        %1105 = vmatpush1.msra.mxu0 %v305
        %1106 = vmatprep.subr.mxu0 0.0
        %1107 = vmatpush1.msra.mxu0 %v308
        %1108 = vmatprep.subr.mxu0 0.0
        %1109 = vmatpush1.msra.mxu0 %v311
        %1110 = vmatprep.subr.mxu0 0.0
        %1111 = vmatpush1.msra.mxu0 %v314
        %1112 = vmatprep.subr.mxu0 0.0
        %1113 = vmatpush1.msra.mxu0 %v317
        %1114 = vmatprep.subr.mxu0 0.0
        %1115 = vmatpush1.msra.mxu0 %v320
        %1116 = vmatprep.subr.mxu0 0.0
        %1117 = vmatpush1.msra.mxu0 %v323
        %1118 = vmatprep.subr.mxu0 0.0
        %1119 = vmatpush1.msra.mxu0 %v326
        %1120 = vmatprep.subr.mxu0 0.0
        %1121 = vmatpush1.msra.mxu0 %v329
        %1122 = vmatprep.subr.mxu0 0.0
        %1123 = vmatpush1.msra.mxu0 %v332
        %1124 = vmatprep.subr.mxu0 0.0
        %1125 = vmatpush1.msra.mxu0 %v335
        %1126 = vmatprep.subr.mxu0 0.0
        %1127 = vmatpush1.msra.mxu0 %v338
        %1128 = vmatprep.subr.mxu0 0.0
        %1129 = vmatpush1.msra.mxu0 %v341
        %1130 = vmatprep.subr.mxu0 0.0
        %1131 = vmatpush1.msra.mxu0 0.0
        %1132 = vmatprep.subr.mxu0 0.0
        %1133 = vmatpush1.msra.mxu0 0.0
        %1134 = vmatprep.subr.mxu0 0.0
        %1135 = vmatpush1.msra.mxu0 0.0
        %1136 = vmatprep.subr.mxu0 0.0
        %1137 = vmatpush1.msra.mxu0 0.0
        %1138 = vmatprep.subr.mxu0 0.0
        %1139 = vmatpush1.msra.mxu0 0.0
        %1140 = vmatprep.subr.mxu0 0.0
        %1141 = vmatpush1.msra.mxu0 0.0
        %1142 = vmatprep.subr.mxu0 0.0
        %1143 = vmatpush1.msra.mxu0 0.0
        %1144 = vmatprep.subr.mxu0 0.0
        %1145 = vmatpush1.msra.mxu0 0.0
        %1146 = vmatprep.subr.mxu0 0.0
        %1147 = vmatpush1.msra.mxu0 0.0
        %1148 = vmatprep.subr.mxu0 0.0
        %1149 = vmatpush1.msra.mxu0 0.0
        %1150 = vmatprep.subr.mxu0 0.0
        %1151 = vmatpush1.msra.mxu0 0.0
        %1152 = vmatprep.subr.mxu0 0.0
        %1153 = vmatpush1.msra.mxu0 0.0
        %1154 = vmatprep.subr.mxu0 0.0
        %1155 = vmatpush1.msra.mxu0 0.0
        %1156 = vmatprep.subr.mxu0 0.0
        %1157 = vmatpush1.msra.mxu0 0.0
        %1158 = vmatprep.subr.mxu0 0.0
        %1159 = vmatpush1.msra.mxu0 0.0
        %1160 = vmatprep.subr.mxu0 0.0
        %1161 = vmatpush1.msra.mxu0 0.0
        %1162 = vmatprep.mubr.f32.mxu0 0.0
        %1163 = vmatmul.mubr.f32.gmra.mrb[0].mxu0 %v1004
        %v1164 = vpop.f32.mrb[0].mxu0
        %v1165 = vadd.f32 %v355, %v1164
        %v1166 = vpop.f32.mrb[0].mxu0
        %1167 = vmatprep.mubr.f32.mxu0 0.0
        %1168 = vmatmul.mubr.f32.gmra.mrb[0].mxu0 %v1005
        %v1169 = vpop.f32.mrb[0].mxu0
        %v1170 = vadd.f32 %v355, %v1169
        %v1171 = vpop.f32.mrb[0].mxu0
        %1172 = vdwg.mxu0
        %v1173 = vadd.f32 %v1015, %v1088
        %v1174 = vadd.f32 %v1016, %v1090
        %v1175 = vadd.f32 %v1018, %v1094
        %v1176 = vadd.f32 %v1019, %v1096
        %v1177 = vxor.u32 %v1173, 2147483648
        %v1178 = vxor.u32 %v1174, 2147483648
        %v1179 = vxor.u32 %v1175, 2147483648
        %v1180 = vxor.u32 %v1176, 2147483648
        %v1181 = vmul.f32 %v1177, 1.442695
        %v1182 = vpow.pop %v1181
        %v1183 = vmul.f32 %v1178, 1.442695
        %v1184 = vpow.pop %v1183
        %v1185 = vmul.f32 %v1179, 1.442695
        %v1186 = vpow.pop %v1185
        %v1187 = vmul.f32 %v1180, 1.442695
        %v1188 = vpow.pop %v1187
        %v1189 = vadd.f32 %v1182, 1.0
        %v1190 = vadd.f32 %v1184, 1.0
        %v1191 = vadd.f32 %v1186, 1.0
        %v1192 = vadd.f32 %v1188, 1.0
        %v1193 = vrcp.pop %v1189
        %v1194 = vmul.f32 1.0, %v1193
        %v1195 = vrcp.pop %v1190
        %v1196 = vmul.f32 1.0, %v1195
        %v1197 = vrcp.pop %v1191
        %v1198 = vmul.f32 1.0, %v1197
        %v1199 = vrcp.pop %v1192
        %v1200 = vmul.f32 1.0, %v1199
        %v1201 = vmul.f32 %v1194, %v1165
        %v1202 = vmul.f32 %v1198, %v1170
        %v1203 = vadd.f32 %v1017, %v1201
        %v1204 = vadd.f32 %v1020, %v1202
        %v1205 = vtanh.pop %v1203
        %v1206 = vtanh.pop %v1204
        %v1207 = vsub.f32 1.0, %v1196
        %v1208 = vsub.f32 1.0, %v1200
        %v1209 = vmul.f32 %v1207, %v1205
        %v1210 = vmul.f32 %v1208, %v1206
        %v1211 = vmul.f32 %v1196, %v1004
        %v1212 = vmul.f32 %v1200, %v1005
        %v1213 = vadd.f32 %v1209, %v1211
        %v1214 = vadd.f32 %v1210, %v1212
        %s1215 = sadd.s32 %s359, 3
        %p1216 = scmp.lt.s32.totalorder %s1215, 8
        %s1217 = scalar_select %p1216, 1, 0
        %v1218 = vstv %s1217
        %vm1219 = vcmp.eq.s32.totalorder %v1218, 1
        %v1220 = vsel %vm1219, %v1213, %v1004
        %v1221 = vsel %vm1219, %v1214, %v1005
        %v1222 = vadd.f32 %v1008, %v1213
        %v1223 = vadd.f32 %v1009, %v1214
        %v1224 = vsel %vm1219, %v1222, %v1008
        %v1225 = vsel %vm1219, %v1223, %v1009
        %1226 = vst [vmem:[#allocation2] sm:$0xff] %v1220
        %1227 = vst [vmem:[#allocation2 + $0x8] sm:$0xff] %v1221
        %1228 = vst [vmem:[#allocation3] sm:$0xff] %v1224
        %1229 = vst [vmem:[#allocation3 + $0x8] sm:$0xff] %v1225
        %p1230 = scmp.eq.s32.totalorder %s26, 1
        // Predicated region
        $region57: #{tpu_custom_call.1} parent=39 // pred_check
          %p1231 = pneg %p1230
        $region58: #{tpu_custom_call.1} parent=39 // pred_check_branch
          %1233 = sbr.rel (%p1231) target = $region60
        $region59: #{tpu_custom_call.1} parent=39 // pred_region
          %v1234 = vld [vmem:[#allocation3] sm:$0xff]
          %v1235 = vld [vmem:[#allocation3 + $0x8] sm:$0xff]
          %v1236 = vmul.f32 %v1234, 0.125
          %v1237 = vmul.f32 %v1235, 0.125
          %v1238 = vld [vmem:[#allocation9] sm:$0xff]
          %v1239 = vld [vmem:[#allocation9 + $0x8] sm:$0xff]
          %v1240 = vld [vmem:[#allocation9 + $0x10] sm:$0xff]
          %v1241 = vld [vmem:[#allocation9 + $0x18] sm:$0xff]
          %v1242 = vld [vmem:[#allocation9 + $0x20] sm:$0xff]
          %v1243 = vld [vmem:[#allocation9 + $0x28] sm:$0xff]
          %v1244 = vld [vmem:[#allocation9 + $0x30] sm:$0xff]
          %v1245 = vld [vmem:[#allocation9 + $0x38] sm:$0xff]
          %v1246 = vld [vmem:[#allocation9 + $0x40] sm:$0xff]
          %v1247 = vld [vmem:[#allocation9 + $0x48] sm:$0xff]
          %v1248 = vld [vmem:[#allocation9 + $0x50] sm:$0xff]
          %v1249 = vld [vmem:[#allocation9 + $0x58] sm:$0xff]
          %v1250 = vld [vmem:[#allocation9 + $0x60] sm:$0xff]
          %v1251 = vld [vmem:[#allocation9 + $0x68] sm:$0xff]
          %v1252 = vld [vmem:[#allocation9 + $0x70] sm:$0xff]
          %v1253 = vld [vmem:[#allocation9 + $0x78] sm:$0xff]
          %v1254 = vld [vmem:[%s4] sm:$0x1]
          %v1256 = vlaneseq
          %v1257 = vshrl.u32 %v1256, 7
          %v1258 = vsub.s32 0, %v1257
          %v1259 = vrot.slane %v1254, %v1258
          %1261 = vmatprep.subr.mxu0 0.0
          %1262 = vmatpush1.msra.mxu0 %v1238
          %1263 = vmatprep.subr.mxu0 0.0
          %1264 = vmatpush1.msra.mxu0 %v1239
          %1265 = vmatprep.subr.mxu0 0.0
          %1266 = vmatpush1.msra.mxu0 %v1240
          %1267 = vmatprep.subr.mxu0 0.0
          %1268 = vmatpush1.msra.mxu0 %v1241
          %1269 = vmatprep.subr.mxu0 0.0
          %1270 = vmatpush1.msra.mxu0 %v1242
          %1271 = vmatprep.subr.mxu0 0.0
          %1272 = vmatpush1.msra.mxu0 %v1243
          %1273 = vmatprep.subr.mxu0 0.0
          %1274 = vmatpush1.msra.mxu0 %v1244
          %1275 = vmatprep.subr.mxu0 0.0
          %1276 = vmatpush1.msra.mxu0 %v1245
          %1277 = vmatprep.subr.mxu0 0.0
          %1278 = vmatpush1.msra.mxu0 %v1246
          %1279 = vmatprep.subr.mxu0 0.0
          %1280 = vmatpush1.msra.mxu0 %v1247
          %1281 = vmatprep.subr.mxu0 0.0
          %1282 = vmatpush1.msra.mxu0 %v1248
          %1283 = vmatprep.subr.mxu0 0.0
          %1284 = vmatpush1.msra.mxu0 %v1249
          %1285 = vmatprep.subr.mxu0 0.0
          %1286 = vmatpush1.msra.mxu0 %v1250
          %1287 = vmatprep.subr.mxu0 0.0
          %1288 = vmatpush1.msra.mxu0 %v1251
          %1289 = vmatprep.subr.mxu0 0.0
          %1290 = vmatpush1.msra.mxu0 %v1252
          %1291 = vmatprep.subr.mxu0 0.0
          %1292 = vmatpush1.msra.mxu0 %v1253
          %1293 = vmatprep.subr.mxu0 0.0
          %1294 = vmatpush1.msra.mxu0 0.0
          %1295 = vmatprep.subr.mxu0 0.0
          %1296 = vmatpush1.msra.mxu0 0.0
          %1297 = vmatprep.subr.mxu0 0.0
          %1298 = vmatpush1.msra.mxu0 0.0
          %1299 = vmatprep.subr.mxu0 0.0
          %1300 = vmatpush1.msra.mxu0 0.0
          %1301 = vmatprep.subr.mxu0 0.0
          %1302 = vmatpush1.msra.mxu0 0.0
          %1303 = vmatprep.subr.mxu0 0.0
          %1304 = vmatpush1.msra.mxu0 0.0
          %1305 = vmatprep.subr.mxu0 0.0
          %1306 = vmatpush1.msra.mxu0 0.0
          %1307 = vmatprep.subr.mxu0 0.0
          %1308 = vmatpush1.msra.mxu0 0.0
          %1309 = vmatprep.subr.mxu0 0.0
          %1310 = vmatpush1.msra.mxu0 0.0
          %1311 = vmatprep.subr.mxu0 0.0
          %1312 = vmatpush1.msra.mxu0 0.0
          %1313 = vmatprep.subr.mxu0 0.0
          %1314 = vmatpush1.msra.mxu0 0.0
          %1315 = vmatprep.subr.mxu0 0.0
          %1316 = vmatpush1.msra.mxu0 0.0
          %1317 = vmatprep.subr.mxu0 0.0
          %1318 = vmatpush1.msra.mxu0 0.0
          %1319 = vmatprep.subr.mxu0 0.0
          %1320 = vmatpush1.msra.mxu0 0.0
          %1321 = vmatprep.subr.mxu0 0.0
          %1322 = vmatpush1.msra.mxu0 0.0
          %1323 = vmatprep.subr.mxu0 0.0
          %1324 = vmatpush1.msra.mxu0 0.0
          %1325 = vmatprep.mubr.f32.mxu0 0.0
          %1326 = vmatmul.mubr.f32.gmra.mrb[0].mxu0 %v1236
          %v1327 = vpop.f32.mrb[0].mxu0
          %v1328 = vadd.f32 %v1259, %v1327
          %v1329 = vpop.f32.mrb[0].mxu0
          %1330 = vmatprep.mubr.f32.mxu0 0.0
          %1331 = vmatmul.mubr.f32.gmra.mrb[0].mxu0 %v1237
          %v1332 = vpop.f32.mrb[0].mxu0
          %v1333 = vadd.f32 %v1259, %v1332
          %v1334 = vpop.f32.mrb[0].mxu0
          %1335 = vdwg.mxu0
          %1336 = vst [vmem:[#allocation10] sm:$0xff] %v1328
          %1337 = vst [vmem:[#allocation10 + $0x8] sm:$0xff] %v1333
        $region60: #{tpu_custom_call.1} parent=39 // pred_fallthru
          _
        // Predicated region
        $region61: #{tpu_custom_call.1} parent=39 // pred_check
          %p1338 = pneg %p163
        $region62: #{tpu_custom_call.1} parent=39 // pred_check_branch
          %1340 = sbr.rel (%p1338) target = $region64
        $region63: #{tpu_custom_call.1} parent=39 // pred_region
          %s1341 = smul.u32 2, %s25
          %s1343 = ssub.s32 256, 256
          %1344 = vsyncadd [#allocation6], %s1343
          %s1345 = smul.addr %s1341, 128
          %s1346 = scalar_lea.hbm %s5, %s1345
          %s1347 = sshll.u32 [#allocation10], 4
          %s1348 = int_to_ptr.vmem [resolvable:$true] %s1347
          %1353 = dma.vmem_to_hbm [thread:$0]  %s1348, 256, %s1346, [#allocation6], 128, 128, 8
        $region64: #{tpu_custom_call.1} parent=39 // pred_fallthru
          _
        // Predicated region
        $region65: #{tpu_custom_call.1} parent=39 // pred_check
          %p1354 = pneg %p163
        $region66: #{tpu_custom_call.1} parent=39 // pred_check_branch
          %1356 = sbr.rel (%p1354) target = $region68
        $region67: #{tpu_custom_call.1} parent=39 // pred_region
          %1357 = dma.done [#allocation6], 256
        $region68: #{tpu_custom_call.1} parent=39 // pred_fallthru
          _
      $region40: #{tpu_custom_call.1} parent=5 // pred_fallthru
        _
      %p1358 = scmp.le.s32.totalorder 2, %s16
      // Predicated region
      $region69: #{tpu_custom_call.1} parent=5 // pred_check
        %p1359 = pneg %p1358
      $region70: #{tpu_custom_call.1} parent=5 // pred_check_branch
        %1361 = sbr.rel (%p1359) target = $region72
      $region71: #{tpu_custom_call.1} parent=5 // pred_region
        %s1362 = ssub.s32 %s16, 2
      $region72: #{tpu_custom_call.1} parent=5 // pred_fallthru
        _
    $region6: #{tpu_custom_call.1} parent=1 // loop_footer
      %s20 = sadd.s32 1, %s16
    $region7: #{tpu_custom_call.1} parent=1 // loop_footer_branch
      %15 = sbr.rel target = $region3
    $region8: #{tpu_custom_call.1} parent=1 // loop_exit
      _
    %1363 = vsyncpa [#allocation5], 1
    %s1364 = scalar_lea.sflag [#allocation5], 1
    %1365 = vsyncpa %s1364, 1
    %1366 = vsyncpa [#allocation8], 1
    %1367 = vsyncpa [#allocation6], 1
    %s1368 = scalar_lea.sflag [#allocation6], 1
    %1369 = vsyncpa %s1368, 1

</llo_original>
